<compile_context>
chip_gen: v6e
topology: v6e:2x2x1
jax: 0.10.0
libtpu: 0.0.40
codegen_flags: <defaults>
</compile_context>

<pallas_src>
import functools

import jax
import jax.numpy as jnp
import numpy as np
from jax.experimental import pallas as pl
from jax.experimental.pallas import tpu as pltpu


def _round_up(x, m):
    return (x + m - 1) // m * m


def _vmem_capacity_bytes(default=64 * 2**20):
    """Physical VMEM per TensorCore; conservative 64 MiB if the query fails."""
    try:
        info = pltpu.get_tpu_info()
        return int(getattr(info, "vmem_capacity_bytes", default))
    except Exception:
        return default


def gru_cell_kernel(
    x_ref,         # [TB, Ip]      input features tile (zero-padded columns)
    h_ref,         # [TB, Hp]      previous hidden state tile (zero-padded)
    wx_all_ref,    # [Ip, 3*Hp]    fused x-side weights [W_xu | W_xr | W_x]
    wh_gates_ref,  # [Hp, 2*Hp]    fused h-side gate weights [W_hu | W_hr]
    wh_cand_ref,   # [Hp, Hp]      h-side candidate weight (multiplies gam_r*h)
    b_gates_ref,   # [1, 2*Hp]     fused gate biases [b_u | b_r] (f32)
    b_cand_ref,    # [1, Hp]       candidate bias (f32)
    out_ref,       # [TB, Hp]      new hidden state tile
    *,
    hp,            # static: padded hidden size (multiple of 128)
):
    w_dtype = wx_all_ref.dtype

    # Cast activations to the weight dtype so bf16 weights give a native
    # single-pass MXU matmul (no silent promotion to multi-pass f32).
    x_mm = x_ref[...].astype(w_dtype)
    h_in = h_ref[...]
    h_f32 = h_in.astype(jnp.float32)
    h_mm = h_in.astype(w_dtype)

    # One MXU pass for all three x-side matmuls (N = 3*Hp).
    xg = jnp.dot(x_mm, wx_all_ref[...], preferred_element_type=jnp.float32)
    # One MXU pass for both h-side gate matmuls (N = 2*Hp).
    hg = jnp.dot(h_mm, wh_gates_ref[...], preferred_element_type=jnp.float32)

    # Update / reset gates.  sigmoid(z) = 0.5*(1 + tanh(0.5*z)): one EUP tanh
    # per element instead of exp + divide (EUP is the tight slot on v5e).
    z = xg[:, : 2 * hp] + hg + b_gates_ref[...]
    gates = 0.5 * (1.0 + jnp.tanh(0.5 * z))
    gam_u = gates[:, :hp]
    gam_r = gates[:, hp:]

    # Candidate hidden state: needs gam_r * h, so this matmul stays separate.
    gated_h = (gam_r * h_f32).astype(w_dtype)
    h_hat = jnp.tanh(
        xg[:, 2 * hp:]
        + jnp.dot(gated_h, wh_cand_ref[...], preferred_element_type=jnp.float32)
        + b_cand_ref[...]
    )

    # h_new = gam_u*h + (1 - gam_u)*h_hat  ==  h_hat + gam_u*(h - h_hat)
    out_ref[...] = (h_hat + gam_u * (h_f32 - h_hat)).astype(out_ref.dtype)


def prepare_gru_params(weight_u, bias_u, weight_r, bias_r, weight, bias,
                       input_size, *, weight_dtype=jnp.bfloat16):
    """Fuse + pad the GRU parameters once (call outside the per-step loop).

    weight_*: [I + H, H] with rows ordered to match torch.cat((x, h), dim=1).
    bias_*:   [1, H]
    weight_dtype: storage/matmul dtype for the weights (default bf16 for
        native single-pass MXU; pass jnp.float32 for exact f32 parity).
    """
    I = input_size
    H = weight_u.shape[1]
    Hp = _round_up(H, 128)            # lane-dense hidden dim
    Ip = _round_up(I, 128)            # lane-dense input (K) dim
    wdt = weight_u.dtype if weight_dtype is None else jnp.dtype(weight_dtype)

    pad_c = lambda w: jnp.pad(w, ((0, 0), (0, Hp - H)))               # biases
    pad_x = lambda w: jnp.pad(w, ((0, Ip - I), (0, Hp - H)))          # x-side
    pad_h = lambda w: jnp.pad(w, ((0, Hp - H), (0, Hp - H)))          # h-side

    wxu, whu = weight_u[:I], weight_u[I:]
    wxr, whr = weight_r[:I], weight_r[I:]
    wx, wh = weight[:I], weight[I:]

    wx_all = jnp.concatenate(
        [pad_x(wxu), pad_x(wxr), pad_x(wx)], axis=1).astype(wdt)       # [Ip, 3*Hp]
    wh_gates = jnp.concatenate(
        [pad_h(whu), pad_h(whr)], axis=1).astype(wdt)                  # [Hp, 2*Hp]
    wh_cand = pad_h(wh).astype(wdt)                                    # [Hp, Hp]

    b_gates = jnp.concatenate(
        [pad_c(bias_u), pad_c(bias_r)], axis=1).astype(jnp.float32)    # [1, 2*Hp]
    b_cand = pad_c(bias).astype(jnp.float32)                           # [1, Hp]

    return dict(wx_all=wx_all, wh_gates=wh_gates, wh_cand=wh_cand,
                b_gates=b_gates, b_cand=b_cand,
                hidden=H, hidden_pad=Hp, input_size=I, input_pad=Ip)


def gru_cell_fused(x, state_old, params):
    """GRU forward using pre-fused/padded params from prepare_gru_params."""
    B, I = x.shape
    H, Hp, Ip = params["hidden"], params["hidden_pad"], params["input_pad"]
    assert params["input_size"] == I
    assert state_old.shape == (B, H)

    x_isz = jnp.dtype(x.dtype).itemsize
    h_isz = jnp.dtype(state_old.dtype).itemsize
    act_isz = max(x_isz, h_isz)
    # bf16 activations pack 16 rows per sublane vreg -> round tiles to 16.
    sub = 16 if min(x_isz, h_isz) <= 2 else 8

    w_isz = jnp.dtype(params["wx_all"].dtype).itemsize
    weight_bytes = (Ip * 3 * Hp + Hp * 2 * Hp + Hp * Hp) * w_isz + 3 * Hp * 4

    vmem_cap = _vmem_capacity_bytes()
    budget = vmem_cap - 8 * 2**20          # ~8 MiB headroom below physical VMEM

    def tile_bytes(tb):
        # double-buffered x/h/out tiles + f32 intermediates (xg,hg,gates,h_hat,acc)
        act = 2 * tb * (Ip + 2 * Hp) * act_isz
        interm = tb * (3 * Hp + 2 * Hp + 2 * Hp + Hp + Hp) * 4
        return act + interm

    # Batch tile: fill the 256-wide MXU on v6e/v7x when the batch and VMEM
    # budget allow (double-buffered-weight worst case used for the fit check).
    TB = None
    if B >= 128:
        for cand in (512, 256, 128):
            if B >= cand and 2 * weight_bytes + tile_bytes(cand) <= budget:
                TB = cand
                break
    if TB is None:
        TB = min(_round_up(max(B, sub), sub), 128)

    B_pad = _round_up(B, TB)
    grid = (B_pad // TB,)
    out_dtype = x.dtype

    # Alias the (padded) previous hidden state buffer to the output.
    io_aliases = {1: 0} if jnp.dtype(state_old.dtype) == jnp.dtype(out_dtype) else {}

    cost = pl.CostEstimate(
        flops=2 * B_pad * (Ip * 3 * Hp + Hp * 2 * Hp + Hp * Hp),
        transcendentals=3 * B_pad * Hp,
        bytes_accessed=int(B_pad * Ip * x_isz
                           + B_pad * Hp * h_isz
                           + B_pad * Hp * jnp.dtype(out_dtype).itemsize
                           + weight_bytes),
    )

    def run(single_buffer_weights):
        x_p = jnp.pad(x, ((0, B_pad - B), (0, Ip - I)))
        h_p = jnp.pad(state_old, ((0, B_pad - B), (0, Hp - H)))

        if single_buffer_weights:
            # Constant index_map -> a second pipeline buffer is pure waste.
            wspec = lambda shape: pl.BlockSpec(shape, lambda i: (0, 0),
                                               pipeline_mode=pl.Buffered(1))
            wfactor = 1
        else:
            wspec = lambda shape: pl.BlockSpec(shape, lambda i: (0, 0))
            wfactor = 2

        vmem_limit = wfactor * weight_bytes + tile_bytes(TB) + (4 << 20)
        vmem_limit = int(min(budget, max(32 * 2**20, vmem_limit)))
        vmem_limit = max(vmem_limit, 16 * 2**20)

        return pl.pallas_call(
            functools.partial(gru_cell_kernel, hp=Hp),
            out_shape=jax.ShapeDtypeStruct((B_pad, Hp), out_dtype),
            grid=grid,
            in_specs=[
                pl.BlockSpec((TB, Ip), lambda i: (i, 0)),     # x
                pl.BlockSpec((TB, Hp), lambda i: (i, 0)),     # state_old
                wspec((Ip, 3 * Hp)),                          # fused x-side weights
                wspec((Hp, 2 * Hp)),                          # fused h-side gate weights
                wspec((Hp, Hp)),                              # candidate h-side weight
                wspec((1, 2 * Hp)),                           # fused gate biases
                wspec((1, Hp)),                               # candidate bias
            ],
            out_specs=pl.BlockSpec((TB, Hp), lambda i: (i, 0)),
            input_output_aliases=io_aliases,
            compiler_params=pltpu.CompilerParams(
                dimension_semantics=("parallel",),
                vmem_limit_bytes=vmem_limit,
            ),
            cost_estimate=cost,
        )(x_p, h_p, params["wx_all"], params["wh_gates"], params["wh_cand"],
          params["b_gates"], params["b_cand"])

    try:
        out_p = run(single_buffer_weights=True)
    except Exception:
        # pl.Buffered(1) unavailable on this JAX/Mosaic build: fall back to the
        # default double-buffered resident weights (functionally identical).
        out_p = run(single_buffer_weights=False)

    return out_p[:B, :H]


def gru_cell(x, state_old, weight_u, bias_u, weight_r, bias_r, weight, bias,
             *, weight_dtype=jnp.bfloat16):
    """Convenience wrapper matching the PyTorch forward signature."""
    params = prepare_gru_params(weight_u, bias_u, weight_r, bias_r, weight, bias,
                                input_size=x.shape[1], weight_dtype=weight_dtype)
    return gru_cell_fused(x, state_old, params)


def gru_cell_ref(x, state_old, weight_u, bias_u, weight_r, bias_r, weight, bias):
    """Pure-JAX reference mirroring the PyTorch forward exactly."""
    cat_xh = jnp.concatenate((x, state_old), axis=1)
    gam_u = jax.nn.sigmoid(cat_xh @ weight_u + bias_u)
    gam_r = jax.nn.sigmoid(cat_xh @ weight_r + bias_r)
    cat_xr = jnp.concatenate((x, gam_r * state_old), axis=1)
    h_hat = jnp.tanh(cat_xr @ weight + bias)
    return gam_u * state_old + (1.0 - gam_u) * h_hat


if __name__ == "__main__":
    batch = 2
    input_size = 16
    hidden = 32
    n = hidden + input_size

    key = jax.random.PRNGKey(0)
    k_x, k_h, k_wu, k_wr, k_w = jax.random.split(key, 5)

    x = jax.random.normal(k_x, (batch, input_size), dtype=jnp.float32)
    state_old = jax.random.normal(k_h, (batch, hidden), dtype=jnp.float32)

    # Deterministic parameter init: variance scaling (Var[W] = 1/n), zero bias.
    weight_u = jax.random.normal(k_wu, (n, hidden), dtype=jnp.float32) / np.sqrt(n)
    weight_r = jax.random.normal(k_wr, (n, hidden), dtype=jnp.float32) / np.sqrt(n)
    weight = jax.random.normal(k_w, (n, hidden), dtype=jnp.float32) / np.sqrt(n)
    bias_u = jnp.zeros((1, hidden), dtype=jnp.float32)
    bias_r = jnp.zeros((1, hidden), dtype=jnp.float32)
    bias = jnp.zeros((1, hidden), dtype=jnp.float32)

    ref = gru_cell_ref(x, state_old, weight_u, bias_u, weight_r, bias_r, weight, bias)

    # 1) f32 weights: exact parity with the PyTorch/JAX reference.
    params_f32 = prepare_gru_params(weight_u, bias_u, weight_r, bias_r, weight, bias,
                                    input_size=input_size, weight_dtype=jnp.float32)
    out_f32 = jax.block_until_ready(gru_cell_fused(x, state_old, params_f32))
    np.testing.assert_allclose(np.asarray(out_f32), np.asarray(ref),
                               rtol=1e-5, atol=1e-5)

    # 2) default bf16 weights: native single-pass MXU (bf16 rounding tolerance).
    params_bf16 = prepare_gru_params(weight_u, bias_u, weight_r, bias_r, weight, bias,
                                     input_size=input_size)
    out_bf16 = jax.block_until_ready(gru_cell_fused(x, state_old, params_bf16))
    np.testing.assert_allclose(np.asarray(out_bf16), np.asarray(ref),
                               rtol=5e-2, atol=5e-2)

    print("KERNEL_OK")
</pallas_src>

<mosaic_0001>
module attributes {stable_mosaic.version = 11 : i64} {
  func.func @gru_cell_kernel(%arg0: i32, %arg1: memref<8x128xf32, #tpu.memory_space<vmem>>, %arg2: memref<8x128xf32, #tpu.memory_space<vmem>>, %arg3: memref<128x384xf32, #tpu.memory_space<vmem>>, %arg4: memref<128x256xf32, #tpu.memory_space<vmem>>, %arg5: memref<128x128xf32, #tpu.memory_space<vmem>>, %arg6: memref<1x256xf32, #tpu.memory_space<vmem>>, %arg7: memref<1x128xf32, #tpu.memory_space<vmem>>, %arg8: memref<8x128xf32, #tpu.memory_space<vmem>>) attributes {dimension_semantics = [#tpu.dimension_semantics<parallel>], iteration_bounds = array<i64: 1>, scalar_prefetch = 0 : i64, scratch_operands = 0 : i64, tpu.core_type = #tpu.core_type<tc>, window_params = [{transform_indices = @transform_0, window_bounds = array<i64: 8, 128>}, {transform_indices = @transform_1, window_bounds = array<i64: 8, 128>}, {pipeline_mode = #tpu.pipeline_mode<synchronous>, transform_indices = @transform_2, window_bounds = array<i64: 128, 384>}, {pipeline_mode = #tpu.pipeline_mode<synchronous>, transform_indices = @transform_3, window_bounds = array<i64: 128, 256>}, {pipeline_mode = #tpu.pipeline_mode<synchronous>, transform_indices = @transform_4, window_bounds = array<i64: 128, 128>}, {pipeline_mode = #tpu.pipeline_mode<synchronous>, transform_indices = @transform_5, window_bounds = array<i64: 1, 256>}, {pipeline_mode = #tpu.pipeline_mode<synchronous>, transform_indices = @transform_6, window_bounds = array<i64: 1, 128>}, {transform_indices = @transform_7, window_bounds = array<i64: 8, 128>}]} {
    %c0 = arith.constant 0 : index
    %c0_0 = arith.constant 0 : index
    %0 = vector.load %arg1[%c0, %c0_0] : memref<8x128xf32, #tpu.memory_space<vmem>>, vector<8x128xf32>
    %c0_1 = arith.constant 0 : index
    %c0_2 = arith.constant 0 : index
    %1 = vector.load %arg2[%c0_1, %c0_2] : memref<8x128xf32, #tpu.memory_space<vmem>>, vector<8x128xf32>
    %c0_3 = arith.constant 0 : index
    %c0_4 = arith.constant 0 : index
    %2 = vector.load %arg3[%c0_3, %c0_4] : memref<128x384xf32, #tpu.memory_space<vmem>>, vector<128x384xf32>
    %cst = arith.constant dense<0.000000e+00> : vector<8x384xf32>
    %3 = tpu.matmul %0, %2, %cst {dimension_numbers = #tpu.dot_dimension_numbers<[1], [0], [0], [1], [0, 0, 1, 1], [], []>} : vector<8x128xf32>, vector<128x384xf32>, vector<8x384xf32> -> vector<8x384xf32>
    %c0_5 = arith.constant 0 : index
    %c0_6 = arith.constant 0 : index
    %4 = vector.load %arg4[%c0_5, %c0_6] : memref<128x256xf32, #tpu.memory_space<vmem>>, vector<128x256xf32>
    %cst_7 = arith.constant dense<0.000000e+00> : vector<8x256xf32>
    %5 = tpu.matmul %1, %4, %cst_7 {dimension_numbers = #tpu.dot_dimension_numbers<[1], [0], [0], [1], [0, 0, 1, 1], [], []>} : vector<8x128xf32>, vector<128x256xf32>, vector<8x256xf32> -> vector<8x256xf32>
    %6 = vector.extract_strided_slice %3 {offsets = [0, 0], sizes = [8, 256], strides = [1, 1]} : vector<8x384xf32> to vector<8x256xf32>
    %7 = arith.addf %6, %5 : vector<8x256xf32>
    %c0_8 = arith.constant 0 : index
    %c0_9 = arith.constant 0 : index
    %8 = vector.load %arg6[%c0_8, %c0_9] : memref<1x256xf32, #tpu.memory_space<vmem>>, vector<1x256xf32>
    %9 = vector.broadcast %8 : vector<1x256xf32> to vector<8x256xf32>
    %10 = arith.addf %7, %9 : vector<8x256xf32>
    %cst_10 = arith.constant 5.000000e-01 : f32
    %11 = vector.broadcast %cst_10 : f32 to vector<8x256xf32>
    %12 = arith.mulf %11, %10 : vector<8x256xf32>
    %13 = math.tanh %12 : vector<8x256xf32>
    %cst_11 = arith.constant 1.000000e+00 : f32
    %14 = vector.broadcast %cst_11 : f32 to vector<8x256xf32>
    %15 = arith.addf %14, %13 : vector<8x256xf32>
    %cst_12 = arith.constant 5.000000e-01 : f32
    %16 = vector.broadcast %cst_12 : f32 to vector<8x256xf32>
    %17 = arith.mulf %16, %15 : vector<8x256xf32>
    %18 = vector.extract_strided_slice %17 {offsets = [0, 0], sizes = [8, 128], strides = [1, 1]} : vector<8x256xf32> to vector<8x128xf32>
    %19 = vector.extract_strided_slice %17 {offsets = [0, 128], sizes = [8, 128], strides = [1, 1]} : vector<8x256xf32> to vector<8x128xf32>
    %20 = arith.mulf %19, %1 : vector<8x128xf32>
    %21 = vector.extract_strided_slice %3 {offsets = [0, 256], sizes = [8, 128], strides = [1, 1]} : vector<8x384xf32> to vector<8x128xf32>
    %c0_13 = arith.constant 0 : index
    %c0_14 = arith.constant 0 : index
    %22 = vector.load %arg5[%c0_13, %c0_14] : memref<128x128xf32, #tpu.memory_space<vmem>>, vector<128x128xf32>
    %cst_15 = arith.constant dense<0.000000e+00> : vector<8x128xf32>
    %23 = tpu.matmul %20, %22, %cst_15 {dimension_numbers = #tpu.dot_dimension_numbers<[1], [0], [0], [1], [0, 0, 1, 1], [], []>} : vector<8x128xf32>, vector<128x128xf32>, vector<8x128xf32> -> vector<8x128xf32>
    %24 = arith.addf %21, %23 : vector<8x128xf32>
    %c0_16 = arith.constant 0 : index
    %c0_17 = arith.constant 0 : index
    %25 = vector.load %arg7[%c0_16, %c0_17] : memref<1x128xf32, #tpu.memory_space<vmem>>, vector<1x128xf32>
    %26 = vector.broadcast %25 : vector<1x128xf32> to vector<8x128xf32>
    %27 = arith.addf %24, %26 : vector<8x128xf32>
    %28 = math.tanh %27 : vector<8x128xf32>
    %29 = arith.subf %1, %28 : vector<8x128xf32>
    %30 = arith.mulf %18, %29 : vector<8x128xf32>
    %31 = arith.addf %28, %30 : vector<8x128xf32>
    %c0_18 = arith.constant 0 : index
    %c0_19 = arith.constant 0 : index
    %32 = vector.load %arg8[%c0_18, %c0_19] : memref<8x128xf32, #tpu.memory_space<vmem>>, vector<8x128xf32>
    tpu.vector_store %arg8[%c0_18, %c0_19], %31 {strides = array<i32>} : memref<8x128xf32, #tpu.memory_space<vmem>>, vector<8x128xf32>,
    return
  }
  func.func @transform_0(%arg0: i32) -> (i32, i32) {
    %c0_i32 = arith.constant 0 : i32
    %c0_i32_0 = arith.constant 0 : i32
    return %arg0, %c0_i32 : i32, i32
  }
  func.func @transform_1(%arg0: i32) -> (i32, i32) {
    %c0_i32 = arith.constant 0 : i32
    %c0_i32_0 = arith.constant 0 : i32
    return %arg0, %c0_i32 : i32, i32
  }
  func.func @transform_2(%arg0: i32) -> (i32, i32) {
    %c0_i32 = arith.constant 0 : i32
    %c0_i32_0 = arith.constant 0 : i32
    %c0_i32_1 = arith.constant 0 : i32
    return %c0_i32, %c0_i32_0 : i32, i32
  }
  func.func @transform_3(%arg0: i32) -> (i32, i32) {
    %c0_i32 = arith.constant 0 : i32
    %c0_i32_0 = arith.constant 0 : i32
    %c0_i32_1 = arith.constant 0 : i32
    return %c0_i32, %c0_i32_0 : i32, i32
  }
  func.func @transform_4(%arg0: i32) -> (i32, i32) {
    %c0_i32 = arith.constant 0 : i32
    %c0_i32_0 = arith.constant 0 : i32
    %c0_i32_1 = arith.constant 0 : i32
    return %c0_i32, %c0_i32_0 : i32, i32
  }
  func.func @transform_5(%arg0: i32) -> (i32, i32) {
    %c0_i32 = arith.constant 0 : i32
    %c0_i32_0 = arith.constant 0 : i32
    %c0_i32_1 = arith.constant 0 : i32
    return %c0_i32, %c0_i32_0 : i32, i32
  }
  func.func @transform_6(%arg0: i32) -> (i32, i32) {
    %c0_i32 = arith.constant 0 : i32
    %c0_i32_0 = arith.constant 0 : i32
    %c0_i32_1 = arith.constant 0 : i32
    return %c0_i32, %c0_i32_0 : i32, i32
  }
  func.func @transform_7(%arg0: i32) -> (i32, i32) {
    %c0_i32 = arith.constant 0 : i32
    %c0_i32_0 = arith.constant 0 : i32
    return %arg0, %c0_i32 : i32, i32
  }
}

module attributes {stable_mosaic.version = 11 : i64} {
  func.func @gru_cell_kernel(%arg0: i32, %arg1: memref<8x128xf32, #tpu.memory_space<vmem>>, %arg2: memref<8x128xf32, #tpu.memory_space<vmem>>, %arg3: memref<128x384xf32, #tpu.memory_space<vmem>>, %arg4: memref<128x256xf32, #tpu.memory_space<vmem>>, %arg5: memref<128x128xf32, #tpu.memory_space<vmem>>, %arg6: memref<1x256xf32, #tpu.memory_space<vmem>>, %arg7: memref<1x128xf32, #tpu.memory_space<vmem>>, %arg8: memref<8x128xf32, #tpu.memory_space<vmem>>) attributes {dimension_semantics = [#tpu.dimension_semantics<parallel>], iteration_bounds = array<i64: 1>, scalar_prefetch = 0 : i64, scratch_operands = 0 : i64, tpu.core_type = #tpu.core_type<tc>, window_params = [{transform_indices = @transform_0, window_bounds = array<i64: 8, 128>}, {transform_indices = @transform_1, window_bounds = array<i64: 8, 128>}, {pipeline_mode = #tpu.pipeline_mode<synchronous>, transform_indices = @transform_2, window_bounds = array<i64: 128, 384>}, {pipeline_mode = #tpu.pipeline_mode<synchronous>, transform_indices = @transform_3, window_bounds = array<i64: 128, 256>}, {pipeline_mode = #tpu.pipeline_mode<synchronous>, transform_indices = @transform_4, window_bounds = array<i64: 128, 128>}, {pipeline_mode = #tpu.pipeline_mode<synchronous>, transform_indices = @transform_5, window_bounds = array<i64: 1, 256>}, {pipeline_mode = #tpu.pipeline_mode<synchronous>, transform_indices = @transform_6, window_bounds = array<i64: 1, 128>}, {transform_indices = @transform_7, window_bounds = array<i64: 8, 128>}]} {
    %c0 = arith.constant 0 : index
    %c0_0 = arith.constant 0 : index
    %0 = vector.load %arg1[%c0, %c0_0] : memref<8x128xf32, #tpu.memory_space<vmem>>, vector<8x128xf32>
    %c0_1 = arith.constant 0 : index
    %c0_2 = arith.constant 0 : index
    %1 = vector.load %arg2[%c0_1, %c0_2] : memref<8x128xf32, #tpu.memory_space<vmem>>, vector<8x128xf32>
    %c0_3 = arith.constant 0 : index
    %c0_4 = arith.constant 0 : index
    %2 = vector.load %arg3[%c0_3, %c0_4] : memref<128x384xf32, #tpu.memory_space<vmem>>, vector<128x384xf32>
    %cst = arith.constant dense<0.000000e+00> : vector<8x384xf32>
    %3 = tpu.matmul %0, %2, %cst {dimension_numbers = #tpu.dot_dimension_numbers<[1], [0], [0], [1], [0, 0, 1, 1], [], []>} : vector<8x128xf32>, vector<128x384xf32>, vector<8x384xf32> -> vector<8x384xf32>
    %c0_5 = arith.constant 0 : index
    %c0_6 = arith.constant 0 : index
    %4 = vector.load %arg4[%c0_5, %c0_6] : memref<128x256xf32, #tpu.memory_space<vmem>>, vector<128x256xf32>
    %cst_7 = arith.constant dense<0.000000e+00> : vector<8x256xf32>
    %5 = tpu.matmul %1, %4, %cst_7 {dimension_numbers = #tpu.dot_dimension_numbers<[1], [0], [0], [1], [0, 0, 1, 1], [], []>} : vector<8x128xf32>, vector<128x256xf32>, vector<8x256xf32> -> vector<8x256xf32>
    %6 = vector.extract_strided_slice %3 {offsets = [0, 0], sizes = [8, 256], strides = [1, 1]} : vector<8x384xf32> to vector<8x256xf32>
    %7 = arith.addf %6, %5 : vector<8x256xf32>
    %c0_8 = arith.constant 0 : index
    %c0_9 = arith.constant 0 : index
    %8 = vector.load %arg6[%c0_8, %c0_9] : memref<1x256xf32, #tpu.memory_space<vmem>>, vector<1x256xf32>
    %9 = vector.broadcast %8 : vector<1x256xf32> to vector<8x256xf32>
    %10 = arith.addf %7, %9 : vector<8x256xf32>
    %cst_10 = arith.constant 5.000000e-01 : f32
    %11 = vector.broadcast %cst_10 : f32 to vector<8x256xf32>
    %12 = arith.mulf %11, %10 : vector<8x256xf32>
    %13 = math.tanh %12 : vector<8x256xf32>
    %cst_11 = arith.constant 1.000000e+00 : f32
    %14 = vector.broadcast %cst_11 : f32 to vector<8x256xf32>
    %15 = arith.addf %14, %13 : vector<8x256xf32>
    %cst_12 = arith.constant 5.000000e-01 : f32
    %16 = vector.broadcast %cst_12 : f32 to vector<8x256xf32>
    %17 = arith.mulf %16, %15 : vector<8x256xf32>
    %18 = vector.extract_strided_slice %17 {offsets = [0, 0], sizes = [8, 128], strides = [1, 1]} : vector<8x256xf32> to vector<8x128xf32>
    %19 = vector.extract_strided_slice %17 {offsets = [0, 128], sizes = [8, 128], strides = [1, 1]} : vector<8x256xf32> to vector<8x128xf32>
    %20 = arith.mulf %19, %1 : vector<8x128xf32>
    %21 = vector.extract_strided_slice %3 {offsets = [0, 256], sizes = [8, 128], strides = [1, 1]} : vector<8x384xf32> to vector<8x128xf32>
    %c0_13 = arith.constant 0 : index
    %c0_14 = arith.constant 0 : index
    %22 = vector.load %arg5[%c0_13, %c0_14] : memref<128x128xf32, #tpu.memory_space<vmem>>, vector<128x128xf32>
    %cst_15 = arith.constant dense<0.000000e+00> : vector<8x128xf32>
    %23 = tpu.matmul %20, %22, %cst_15 {dimension_numbers = #tpu.dot_dimension_numbers<[1], [0], [0], [1], [0, 0, 1, 1], [], []>} : vector<8x128xf32>, vector<128x128xf32>, vector<8x128xf32> -> vector<8x128xf32>
    %24 = arith.addf %21, %23 : vector<8x128xf32>
    %c0_16 = arith.constant 0 : index
    %c0_17 = arith.constant 0 : index
    %25 = vector.load %arg7[%c0_16, %c0_17] : memref<1x128xf32, #tpu.memory_space<vmem>>, vector<1x128xf32>
    %26 = vector.broadcast %25 : vector<1x128xf32> to vector<8x128xf32>
    %27 = arith.addf %24, %26 : vector<8x128xf32>
    %28 = math.tanh %27 : vector<8x128xf32>
    %29 = arith.subf %1, %28 : vector<8x128xf32>
    %30 = arith.mulf %18, %29 : vector<8x128xf32>
    %31 = arith.addf %28, %30 : vector<8x128xf32>
    %c0_18 = arith.constant 0 : index
    %c0_19 = arith.constant 0 : index
    %32 = vector.load %arg8[%c0_18, %c0_19] : memref<8x128xf32, #tpu.memory_space<vmem>>, vector<8x128xf32>
    tpu.vector_store %arg8[%c0_18, %c0_19], %31 {strides = array<i32>} : memref<8x128xf32, #tpu.memory_space<vmem>>, vector<8x128xf32>,
    return
  }
  func.func @transform_0(%arg0: i32) -> (i32, i32) {
    %c0_i32 = arith.constant 0 : i32
    %c0_i32_0 = arith.constant 0 : i32
    return %arg0, %c0_i32 : i32, i32
  }
  func.func @transform_1(%arg0: i32) -> (i32, i32) {
    %c0_i32 = arith.constant 0 : i32
    %c0_i32_0 = arith.constant 0 : i32
    return %arg0, %c0_i32 : i32, i32
  }
  func.func @transform_2(%arg0: i32) -> (i32, i32) {
    %c0_i32 = arith.constant 0 : i32
    %c0_i32_0 = arith.constant 0 : i32
    %c0_i32_1 = arith.constant 0 : i32
    return %c0_i32, %c0_i32_0 : i32, i32
  }
  func.func @transform_3(%arg0: i32) -> (i32, i32) {
    %c0_i32 = arith.constant 0 : i32
    %c0_i32_0 = arith.constant 0 : i32
    %c0_i32_1 = arith.constant 0 : i32
    return %c0_i32, %c0_i32_0 : i32, i32
  }
  func.func @transform_4(%arg0: i32) -> (i32, i32) {
    %c0_i32 = arith.constant 0 : i32
    %c0_i32_0 = arith.constant 0 : i32
    %c0_i32_1 = arith.constant 0 : i32
    return %c0_i32, %c0_i32_0 : i32, i32
  }
  func.func @transform_5(%arg0: i32) -> (i32, i32) {
    %c0_i32 = arith.constant 0 : i32
    %c0_i32_0 = arith.constant 0 : i32
    %c0_i32_1 = arith.constant 0 : i32
    return %c0_i32, %c0_i32_0 : i32, i32
  }
  func.func @transform_6(%arg0: i32) -> (i32, i32) {
    %c0_i32 = arith.constant 0 : i32
    %c0_i32_0 = arith.constant 0 : i32
    %c0_i32_1 = arith.constant 0 : i32
    return %c0_i32, %c0_i32_0 : i32, i32
  }
  func.func @transform_7(%arg0: i32) -> (i32, i32) {
    %c0_i32 = arith.constant 0 : i32
    %c0_i32_0 = arith.constant 0 : i32
    return %arg0, %c0_i32 : i32, i32
  }
}

</mosaic_0001>

<llo_original>
// kernel: tpu_custom_call.1
$region0: #{tpu_custom_call.1}
  #allocation0 [shape = 'u32[]', space=smem, size = 0x4, offset = 0x4, fixed_abs, tag = 'smem constant byte address 0x4 - core index']
  #allocation1 [shape = 'u32[144,128]{1,0:T(1,128)}', space=vmem, size = 0x12000, scoped, tag = 'internal scratch']
  %s0 = inlined_call_operand.vmem [shape: f32[8,128], index: 0, kind: input, shape index: {}]
  %s1 = inlined_call_operand.hbm [shape: f32[8,128], index: 1, kind: input, shape index: {}, may-alias: {1,7}]
  %s2 = inlined_call_operand.hbm [shape: f32[128,384], index: 2, kind: input, shape index: {}]
  %s3 = inlined_call_operand.hbm [shape: f32[128,256], index: 3, kind: input, shape index: {}]
  %s4 = inlined_call_operand.hbm [shape: f32[128,128], index: 4, kind: input, shape index: {}]
  %s5 = inlined_call_operand.vmem [shape: f32[1,256], index: 5, kind: input, shape index: {}]
  %s6 = inlined_call_operand.vmem [shape: f32[1,128], index: 6, kind: input, shape index: {}]
  %s7 = inlined_call_operand.hbm [shape: f32[8,128], index: 7, kind: output, shape index: {}, may-alias: {1,7}]
  %s8 = sld [smem:[#allocation0]]
  $region54: #{tpu_custom_call.1} parent=0
    _
  %s10 = ssub.s32 1, %s8
  %s11 = scalar_select 0, %s10, %s8
  $region1: #{tpu_custom_call.1} parent=0
    #allocation2 [shape = 'u8[4096]{0}', space=vmem, size = 0x1000, scoped, tag = 'input window, operand 1, single buffered']
    #allocation3 [shape = 's32[1]{0}', space=sflag, size = 0x4, scoped, tag = 'scoped memory for tpu_custom_call.1']
    #allocation4 [shape = 's32[1]{0}', space=sflag, size = 0x4, scoped, tag = 'scoped memory for tpu_custom_call.1']
    #allocation5 [shape = 'u8[196608]{0}', space=vmem, size = 0x30000, scoped, tag = 'input window, operand 2, single buffered']
    #allocation6 [shape = 's32[1]{0}', space=sflag, size = 0x4, scoped, tag = 'scoped memory for tpu_custom_call.1']
    #allocation7 [shape = 'u8[131072]{0}', space=vmem, size = 0x20000, scoped, tag = 'input window, operand 3, single buffered']
    #allocation8 [shape = 'u8[65536]{0}', space=vmem, size = 0x10000, scoped, tag = 'input window, operand 4, single buffered']
    #allocation9 [shape = 's32[1]{0}', space=sflag, size = 0x4, scoped, tag = 'scoped memory for tpu_custom_call.1']
    #allocation10 [shape = 'u8[4096]{0}', space=vmem, size = 0x1000, scoped, tag = 'output window, operand 0, single buffered']
    %12 = vsyncpa [#allocation3], 0
    %13 = vsyncpa [#allocation6], 0
    %14 = vsyncpa [#allocation9], 0
    %15 = vsyncpa [#allocation4], 0
    // Predicated region
    $region2: #{tpu_custom_call.1} parent=1 // pred_check
      _
    $region3: #{tpu_custom_call.1} parent=1 // pred_check_branch
      %17 = sbr.rel (0) target = $region5
    $region4: #{tpu_custom_call.1} parent=1 // pred_region
      _
    $region5: #{tpu_custom_call.1} parent=1 // pred_fallthru
      _
    // Predicated region
    $region6: #{tpu_custom_call.1} parent=1 // pred_check
      _
    $region7: #{tpu_custom_call.1} parent=1 // pred_check_branch
      %19 = sbr.rel (0) target = $region9
    $region8: #{tpu_custom_call.1} parent=1 // pred_region
      %s21 = ssub.s32 128, 128
      %22 = vsyncadd [#allocation3], %s21
      %s24 = sshll.u32 [#allocation2], 4
      %s25 = int_to_ptr.vmem [resolvable:$true] %s24
      %27 = dma.hbm_to_vmem [thread:$0]  %s1, 128, %s25, [#allocation3]
    $region9: #{tpu_custom_call.1} parent=1 // pred_fallthru
      _
    // Predicated region
    $region10: #{tpu_custom_call.1} parent=1 // pred_check
      _
    $region11: #{tpu_custom_call.1} parent=1 // pred_check_branch
      %29 = sbr.rel (0) target = $region13
    $region12: #{tpu_custom_call.1} parent=1 // pred_region
      %s31 = ssub.s32 6144, 6144
      %32 = vsyncadd [#allocation6], %s31
      %s33 = sshll.u32 [#allocation5], 4
      %s34 = int_to_ptr.vmem [resolvable:$true] %s33
      %39 = dma.hbm_to_vmem [thread:$0]  %s2, 6144, %s34, [#allocation6], 384, 384, 24
    $region13: #{tpu_custom_call.1} parent=1 // pred_fallthru
      _
    // Predicated region
    $region14: #{tpu_custom_call.1} parent=1 // pred_check
      _
    $region15: #{tpu_custom_call.1} parent=1 // pred_check_branch
      %41 = sbr.rel (0) target = $region17
    $region16: #{tpu_custom_call.1} parent=1 // pred_region
      %s43 = ssub.s32 4096, 4096
      %44 = vsyncadd [#allocation6], %s43
      %s45 = sshll.u32 [#allocation7], 4
      %s46 = int_to_ptr.vmem [resolvable:$true] %s45
      %51 = dma.hbm_to_vmem [thread:$0]  %s3, 4096, %s46, [#allocation6], 256, 256, 16
    $region17: #{tpu_custom_call.1} parent=1 // pred_fallthru
      _
    // Predicated region
    $region18: #{tpu_custom_call.1} parent=1 // pred_check
      _
    $region19: #{tpu_custom_call.1} parent=1 // pred_check_branch
      %53 = sbr.rel (0) target = $region21
    $region20: #{tpu_custom_call.1} parent=1 // pred_region
      %s55 = ssub.s32 2048, 2048
      %56 = vsyncadd [#allocation9], %s55
      %s57 = sshll.u32 [#allocation8], 4
      %s58 = int_to_ptr.vmem [resolvable:$true] %s57
      %63 = dma.hbm_to_vmem [thread:$0]  %s4, 2048, %s58, [#allocation9], 128, 128, 8
    $region21: #{tpu_custom_call.1} parent=1 // pred_fallthru
      _
    // Predicated region
    $region22: #{tpu_custom_call.1} parent=1 // pred_check
      _
    $region23: #{tpu_custom_call.1} parent=1 // pred_check_branch
      %65 = sbr.rel (0) target = $region25
    $region24: #{tpu_custom_call.1} parent=1 // pred_region
      _
    $region25: #{tpu_custom_call.1} parent=1 // pred_fallthru
      _
    // Predicated region
    $region26: #{tpu_custom_call.1} parent=1 // pred_check
      _
    $region27: #{tpu_custom_call.1} parent=1 // pred_check_branch
      %67 = sbr.rel (0) target = $region29
    $region28: #{tpu_custom_call.1} parent=1 // pred_region
      _
    $region29: #{tpu_custom_call.1} parent=1 // pred_fallthru
      _
    // Predicated region
    $region30: #{tpu_custom_call.1} parent=1 // pred_check
      _
    $region31: #{tpu_custom_call.1} parent=1 // pred_check_branch
      %69 = sbr.rel (0) target = $region33
    $region32: #{tpu_custom_call.1} parent=1 // pred_region
      %70 = dma.done [#allocation3], 128
    $region33: #{tpu_custom_call.1} parent=1 // pred_fallthru
      _
    // Predicated region
    $region34: #{tpu_custom_call.1} parent=1 // pred_check
      _
    $region35: #{tpu_custom_call.1} parent=1 // pred_check_branch
      %72 = sbr.rel (0) target = $region37
    $region36: #{tpu_custom_call.1} parent=1 // pred_region
      %73 = dma.done [#allocation6], 6144
    $region37: #{tpu_custom_call.1} parent=1 // pred_fallthru
      _
    // Predicated region
    $region38: #{tpu_custom_call.1} parent=1 // pred_check
      _
    $region39: #{tpu_custom_call.1} parent=1 // pred_check_branch
      %75 = sbr.rel (0) target = $region41
    $region40: #{tpu_custom_call.1} parent=1 // pred_region
      %76 = dma.done [#allocation6], 4096
    $region41: #{tpu_custom_call.1} parent=1 // pred_fallthru
      _
    // Predicated region
    $region42: #{tpu_custom_call.1} parent=1 // pred_check
      _
    $region43: #{tpu_custom_call.1} parent=1 // pred_check_branch
      %78 = sbr.rel (0) target = $region45
    $region44: #{tpu_custom_call.1} parent=1 // pred_region
      %79 = dma.done [#allocation9], 2048
    $region45: #{tpu_custom_call.1} parent=1 // pred_fallthru
      _
    %v80 = vld [vmem:[%s0] sm:$0xff]
    %v81 = vld [vmem:[#allocation2] sm:$0xff]
    %v82 = vld [vmem:[#allocation5] sm:$0xff]
    %v83 = vld [vmem:[#allocation5 + $0x8] sm:$0xff]
    %v84 = vld [vmem:[#allocation5 + $0x10] sm:$0xff]
    %v85 = vld [vmem:[#allocation5 + $0x18] sm:$0xff]
    %v86 = vld [vmem:[#allocation5 + $0x20] sm:$0xff]
    %v87 = vld [vmem:[#allocation5 + $0x28] sm:$0xff]
    %v88 = vld [vmem:[#allocation5 + $0x30] sm:$0xff]
    %v89 = vld [vmem:[#allocation5 + $0x38] sm:$0xff]
    %v90 = vld [vmem:[#allocation5 + $0x40] sm:$0xff]
    %v91 = vld [vmem:[#allocation5 + $0x48] sm:$0xff]
    %v92 = vld [vmem:[#allocation5 + $0x50] sm:$0xff]
    %v93 = vld [vmem:[#allocation5 + $0x58] sm:$0xff]
    %v94 = vld [vmem:[#allocation5 + $0x60] sm:$0xff]
    %v95 = vld [vmem:[#allocation5 + $0x68] sm:$0xff]
    %v96 = vld [vmem:[#allocation5 + $0x70] sm:$0xff]
    %v97 = vld [vmem:[#allocation5 + $0x78] sm:$0xff]
    %v98 = vld [vmem:[#allocation5 + $0x80] sm:$0xff]
    %v99 = vld [vmem:[#allocation5 + $0x88] sm:$0xff]
    %v100 = vld [vmem:[#allocation5 + $0x90] sm:$0xff]
    %v101 = vld [vmem:[#allocation5 + $0x98] sm:$0xff]
    %v102 = vld [vmem:[#allocation5 + $0xa0] sm:$0xff]
    %v103 = vld [vmem:[#allocation5 + $0xa8] sm:$0xff]
    %v104 = vld [vmem:[#allocation5 + $0xb0] sm:$0xff]
    %v105 = vld [vmem:[#allocation5 + $0xb8] sm:$0xff]
    %v106 = vld [vmem:[#allocation5 + $0xc0] sm:$0xff]
    %v107 = vld [vmem:[#allocation5 + $0xc8] sm:$0xff]
    %v108 = vld [vmem:[#allocation5 + $0xd0] sm:$0xff]
    %v109 = vld [vmem:[#allocation5 + $0xd8] sm:$0xff]
    %v110 = vld [vmem:[#allocation5 + $0xe0] sm:$0xff]
    %v111 = vld [vmem:[#allocation5 + $0xe8] sm:$0xff]
    %v112 = vld [vmem:[#allocation5 + $0xf0] sm:$0xff]
    %v113 = vld [vmem:[#allocation5 + $0xf8] sm:$0xff]
    %v114 = vld [vmem:[#allocation5 + $0x100] sm:$0xff]
    %v115 = vld [vmem:[#allocation5 + $0x108] sm:$0xff]
    %v116 = vld [vmem:[#allocation5 + $0x110] sm:$0xff]
    %v117 = vld [vmem:[#allocation5 + $0x118] sm:$0xff]
    %v118 = vld [vmem:[#allocation5 + $0x120] sm:$0xff]
    %v119 = vld [vmem:[#allocation5 + $0x128] sm:$0xff]
    %v120 = vld [vmem:[#allocation5 + $0x130] sm:$0xff]
    %v121 = vld [vmem:[#allocation5 + $0x138] sm:$0xff]
    %v122 = vld [vmem:[#allocation5 + $0x140] sm:$0xff]
    %v123 = vld [vmem:[#allocation5 + $0x148] sm:$0xff]
    %v124 = vld [vmem:[#allocation5 + $0x150] sm:$0xff]
    %v125 = vld [vmem:[#allocation5 + $0x158] sm:$0xff]
    %v126 = vld [vmem:[#allocation5 + $0x160] sm:$0xff]
    %v127 = vld [vmem:[#allocation5 + $0x168] sm:$0xff]
    %v128 = vld [vmem:[#allocation5 + $0x170] sm:$0xff]
    %v129 = vld [vmem:[#allocation5 + $0x178] sm:$0xff]
    %130 = vmatprep.subr.mxu0 %v128
    %131 = vmatpush1.msra.mxu0 %v127
    %132 = vmatprep.subr.mxu0 %v125
    %133 = vmatpush1.msra.mxu0 %v124
    %134 = vmatprep.subr.mxu0 %v122
    %135 = vmatpush1.msra.mxu0 %v121
    %136 = vmatprep.subr.mxu0 %v119
    %137 = vmatpush1.msra.mxu0 %v118
    %138 = vmatprep.subr.mxu0 %v116
    %139 = vmatpush1.msra.mxu0 %v115
    %140 = vmatprep.subr.mxu0 %v113
    %141 = vmatpush1.msra.mxu0 %v112
    %142 = vmatprep.subr.mxu0 %v110
    %143 = vmatpush1.msra.mxu0 %v109
    %144 = vmatprep.subr.mxu0 %v107
    %145 = vmatpush1.msra.mxu0 %v106
    %146 = vmatprep.subr.mxu0 %v104
    %147 = vmatpush1.msra.mxu0 %v103
    %148 = vmatprep.subr.mxu0 %v101
    %149 = vmatpush1.msra.mxu0 %v100
    %150 = vmatprep.subr.mxu0 %v98
    %151 = vmatpush1.msra.mxu0 %v97
    %152 = vmatprep.subr.mxu0 %v95
    %153 = vmatpush1.msra.mxu0 %v94
    %154 = vmatprep.subr.mxu0 %v92
    %155 = vmatpush1.msra.mxu0 %v91
    %156 = vmatprep.subr.mxu0 %v89
    %157 = vmatpush1.msra.mxu0 %v88
    %158 = vmatprep.subr.mxu0 %v86
    %159 = vmatpush1.msra.mxu0 %v85
    %160 = vmatprep.subr.mxu0 %v83
    %161 = vmatpush1.msra.mxu0 %v82
    %162 = vmatprep.subr.mxu0 0.0
    %163 = vmatpush2.msra.mxu0 0.0
    %164 = vmatprep.subr.mxu0 0.0
    %165 = vmatpush2.msra.mxu0 0.0
    %166 = vmatprep.subr.mxu0 0.0
    %167 = vmatpush2.msra.mxu0 0.0
    %168 = vmatprep.subr.mxu0 0.0
    %169 = vmatpush2.msra.mxu0 0.0
    %170 = vmatprep.subr.mxu0 0.0
    %171 = vmatpush2.msra.mxu0 0.0
    %172 = vmatprep.subr.mxu0 0.0
    %173 = vmatpush2.msra.mxu0 0.0
    %174 = vmatprep.subr.mxu0 0.0
    %175 = vmatpush2.msra.mxu0 0.0
    %176 = vmatprep.subr.mxu0 0.0
    %177 = vmatpush2.msra.mxu0 0.0
    %178 = vmatprep.subr.mxu0 0.0
    %179 = vmatpush2.msra.mxu0 0.0
    %180 = vmatprep.subr.mxu0 0.0
    %181 = vmatpush2.msra.mxu0 0.0
    %182 = vmatprep.subr.mxu0 0.0
    %183 = vmatpush2.msra.mxu0 0.0
    %184 = vmatprep.subr.mxu0 0.0
    %185 = vmatpush2.msra.mxu0 0.0
    %186 = vmatprep.subr.mxu0 0.0
    %187 = vmatpush2.msra.mxu0 0.0
    %188 = vmatprep.subr.mxu0 0.0
    %189 = vmatpush2.msra.mxu0 0.0
    %190 = vmatprep.subr.mxu0 0.0
    %191 = vmatpush2.msra.mxu0 0.0
    %192 = vmatprep.subr.mxu0 0.0
    %193 = vmatpush2.msra.mxu0 0.0
    %194 = vmatprep.mubr.f32.mxu0 0.0
    %195 = vmatmul.mubr.f32.gmra.mxu0 %v80
    %v196 = vpop.f32.mrf.mxu0
    %v197 = vadd.f32 0.0, %v196
    %v198 = vpop.f32.mrf.mxu0
    %v199 = vadd.f32 0.0, %v198
    %200 = vdwg.mxu0
    %201 = vmatprep.subr.mxu0 0.0
    %202 = vmatpush1.msra.mxu0 %v129
    %203 = vmatprep.subr.mxu0 0.0
    %204 = vmatpush1.msra.mxu0 %v126
    %205 = vmatprep.subr.mxu0 0.0
    %206 = vmatpush1.msra.mxu0 %v123
    %207 = vmatprep.subr.mxu0 0.0
    %208 = vmatpush1.msra.mxu0 %v120
    %209 = vmatprep.subr.mxu0 0.0
    %210 = vmatpush1.msra.mxu0 %v117
    %211 = vmatprep.subr.mxu0 0.0
    %212 = vmatpush1.msra.mxu0 %v114
    %213 = vmatprep.subr.mxu0 0.0
    %214 = vmatpush1.msra.mxu0 %v111
    %215 = vmatprep.subr.mxu0 0.0
    %216 = vmatpush1.msra.mxu0 %v108
    %217 = vmatprep.subr.mxu0 0.0
    %218 = vmatpush1.msra.mxu0 %v105
    %219 = vmatprep.subr.mxu0 0.0
    %220 = vmatpush1.msra.mxu0 %v102
    %221 = vmatprep.subr.mxu0 0.0
    %222 = vmatpush1.msra.mxu0 %v99
    %223 = vmatprep.subr.mxu0 0.0
    %224 = vmatpush1.msra.mxu0 %v96
    %225 = vmatprep.subr.mxu0 0.0
    %226 = vmatpush1.msra.mxu0 %v93
    %227 = vmatprep.subr.mxu0 0.0
    %228 = vmatpush1.msra.mxu0 %v90
    %229 = vmatprep.subr.mxu0 0.0
    %230 = vmatpush1.msra.mxu0 %v87
    %231 = vmatprep.subr.mxu0 0.0
    %232 = vmatpush1.msra.mxu0 %v84
    %233 = vmatprep.subr.mxu0 0.0
    %234 = vmatpush2.msra.mxu0 0.0
    %235 = vmatprep.subr.mxu0 0.0
    %236 = vmatpush2.msra.mxu0 0.0
    %237 = vmatprep.subr.mxu0 0.0
    %238 = vmatpush2.msra.mxu0 0.0
    %239 = vmatprep.subr.mxu0 0.0
    %240 = vmatpush2.msra.mxu0 0.0
    %241 = vmatprep.subr.mxu0 0.0
    %242 = vmatpush2.msra.mxu0 0.0
    %243 = vmatprep.subr.mxu0 0.0
    %244 = vmatpush2.msra.mxu0 0.0
    %245 = vmatprep.subr.mxu0 0.0
    %246 = vmatpush2.msra.mxu0 0.0
    %247 = vmatprep.subr.mxu0 0.0
    %248 = vmatpush2.msra.mxu0 0.0
    %249 = vmatprep.subr.mxu0 0.0
    %250 = vmatpush2.msra.mxu0 0.0
    %251 = vmatprep.subr.mxu0 0.0
    %252 = vmatpush2.msra.mxu0 0.0
    %253 = vmatprep.subr.mxu0 0.0
    %254 = vmatpush2.msra.mxu0 0.0
    %255 = vmatprep.subr.mxu0 0.0
    %256 = vmatpush2.msra.mxu0 0.0
    %257 = vmatprep.subr.mxu0 0.0
    %258 = vmatpush2.msra.mxu0 0.0
    %259 = vmatprep.subr.mxu0 0.0
    %260 = vmatpush2.msra.mxu0 0.0
    %261 = vmatprep.subr.mxu0 0.0
    %262 = vmatpush2.msra.mxu0 0.0
    %263 = vmatprep.subr.mxu0 0.0
    %264 = vmatpush2.msra.mxu0 0.0
    %265 = vmatprep.mubr.f32.mxu0 0.0
    %266 = vmatmul.mubr.f32.gmra.mxu0 %v80
    %v267 = vpop.f32.mrf.mxu0
    %v268 = vadd.f32 0.0, %v267
    %v269 = vpop.f32.mrf.mxu0
    %270 = vdwg.mxu0
    %v271 = vld [vmem:[#allocation7] sm:$0xff]
    %v272 = vld [vmem:[#allocation7 + $0x8] sm:$0xff]
    %v273 = vld [vmem:[#allocation7 + $0x10] sm:$0xff]
    %v274 = vld [vmem:[#allocation7 + $0x18] sm:$0xff]
    %v275 = vld [vmem:[#allocation7 + $0x20] sm:$0xff]
    %v276 = vld [vmem:[#allocation7 + $0x28] sm:$0xff]
    %v277 = vld [vmem:[#allocation7 + $0x30] sm:$0xff]
    %v278 = vld [vmem:[#allocation7 + $0x38] sm:$0xff]
    %v279 = vld [vmem:[#allocation7 + $0x40] sm:$0xff]
    %v280 = vld [vmem:[#allocation7 + $0x48] sm:$0xff]
    %v281 = vld [vmem:[#allocation7 + $0x50] sm:$0xff]
    %v282 = vld [vmem:[#allocation7 + $0x58] sm:$0xff]
    %v283 = vld [vmem:[#allocation7 + $0x60] sm:$0xff]
    %v284 = vld [vmem:[#allocation7 + $0x68] sm:$0xff]
    %v285 = vld [vmem:[#allocation7 + $0x70] sm:$0xff]
    %v286 = vld [vmem:[#allocation7 + $0x78] sm:$0xff]
    %v287 = vld [vmem:[#allocation7 + $0x80] sm:$0xff]
    %v288 = vld [vmem:[#allocation7 + $0x88] sm:$0xff]
    %v289 = vld [vmem:[#allocation7 + $0x90] sm:$0xff]
    %v290 = vld [vmem:[#allocation7 + $0x98] sm:$0xff]
    %v291 = vld [vmem:[#allocation7 + $0xa0] sm:$0xff]
    %v292 = vld [vmem:[#allocation7 + $0xa8] sm:$0xff]
    %v293 = vld [vmem:[#allocation7 + $0xb0] sm:$0xff]
    %v294 = vld [vmem:[#allocation7 + $0xb8] sm:$0xff]
    %v295 = vld [vmem:[#allocation7 + $0xc0] sm:$0xff]
    %v296 = vld [vmem:[#allocation7 + $0xc8] sm:$0xff]
    %v297 = vld [vmem:[#allocation7 + $0xd0] sm:$0xff]
    %v298 = vld [vmem:[#allocation7 + $0xd8] sm:$0xff]
    %v299 = vld [vmem:[#allocation7 + $0xe0] sm:$0xff]
    %v300 = vld [vmem:[#allocation7 + $0xe8] sm:$0xff]
    %v301 = vld [vmem:[#allocation7 + $0xf0] sm:$0xff]
    %v302 = vld [vmem:[#allocation7 + $0xf8] sm:$0xff]
    %303 = vmatprep.subr.mxu0 %v302
    %304 = vmatpush1.msra.mxu0 %v301
    %305 = vmatprep.subr.mxu0 %v300
    %306 = vmatpush1.msra.mxu0 %v299
    %307 = vmatprep.subr.mxu0 %v298
    %308 = vmatpush1.msra.mxu0 %v297
    %309 = vmatprep.subr.mxu0 %v296
    %310 = vmatpush1.msra.mxu0 %v295
    %311 = vmatprep.subr.mxu0 %v294
    %312 = vmatpush1.msra.mxu0 %v293
    %313 = vmatprep.subr.mxu0 %v292
    %314 = vmatpush1.msra.mxu0 %v291
    %315 = vmatprep.subr.mxu0 %v290
    %316 = vmatpush1.msra.mxu0 %v289
    %317 = vmatprep.subr.mxu0 %v288
    %318 = vmatpush1.msra.mxu0 %v287
    %319 = vmatprep.subr.mxu0 %v286
    %320 = vmatpush1.msra.mxu0 %v285
    %321 = vmatprep.subr.mxu0 %v284
    %322 = vmatpush1.msra.mxu0 %v283
    %323 = vmatprep.subr.mxu0 %v282
    %324 = vmatpush1.msra.mxu0 %v281
    %325 = vmatprep.subr.mxu0 %v280
    %326 = vmatpush1.msra.mxu0 %v279
    %327 = vmatprep.subr.mxu0 %v278
    %328 = vmatpush1.msra.mxu0 %v277
    %329 = vmatprep.subr.mxu0 %v276
    %330 = vmatpush1.msra.mxu0 %v275
    %331 = vmatprep.subr.mxu0 %v274
    %332 = vmatpush1.msra.mxu0 %v273
    %333 = vmatprep.subr.mxu0 %v272
    %334 = vmatpush1.msra.mxu0 %v271
    %335 = vmatprep.subr.mxu0 0.0
    %336 = vmatpush2.msra.mxu0 0.0
    %337 = vmatprep.subr.mxu0 0.0
    %338 = vmatpush2.msra.mxu0 0.0
    %339 = vmatprep.subr.mxu0 0.0
    %340 = vmatpush2.msra.mxu0 0.0
    %341 = vmatprep.subr.mxu0 0.0
    %342 = vmatpush2.msra.mxu0 0.0
    %343 = vmatprep.subr.mxu0 0.0
    %344 = vmatpush2.msra.mxu0 0.0
    %345 = vmatprep.subr.mxu0 0.0
    %346 = vmatpush2.msra.mxu0 0.0
    %347 = vmatprep.subr.mxu0 0.0
    %348 = vmatpush2.msra.mxu0 0.0
    %349 = vmatprep.subr.mxu0 0.0
    %350 = vmatpush2.msra.mxu0 0.0
    %351 = vmatprep.subr.mxu0 0.0
    %352 = vmatpush2.msra.mxu0 0.0
    %353 = vmatprep.subr.mxu0 0.0
    %354 = vmatpush2.msra.mxu0 0.0
    %355 = vmatprep.subr.mxu0 0.0
    %356 = vmatpush2.msra.mxu0 0.0
    %357 = vmatprep.subr.mxu0 0.0
    %358 = vmatpush2.msra.mxu0 0.0
    %359 = vmatprep.subr.mxu0 0.0
    %360 = vmatpush2.msra.mxu0 0.0
    %361 = vmatprep.subr.mxu0 0.0
    %362 = vmatpush2.msra.mxu0 0.0
    %363 = vmatprep.subr.mxu0 0.0
    %364 = vmatpush2.msra.mxu0 0.0
    %365 = vmatprep.subr.mxu0 0.0
    %366 = vmatpush2.msra.mxu0 0.0
    %367 = vmatprep.mubr.f32.mxu0 0.0
    %368 = vmatmul.mubr.f32.gmra.mxu0 %v81
    %v369 = vpop.f32.mrf.mxu0
    %v370 = vadd.f32 0.0, %v369
    %v371 = vpop.f32.mrf.mxu0
    %v372 = vadd.f32 0.0, %v371
    %373 = vdwg.mxu0
    %v374 = vadd.f32 %v197, %v370
    %v375 = vadd.f32 %v199, %v372
    %v376 = vld [vmem:[%s5] sm:$0x3]
    %v378 = vlaneseq
    %v379 = vshrl.u32 %v378, 7
    %v380 = vsub.s32 0, %v379
    %v381 = vrot.slane %v376, %v380
    %v382 = vlaneseq
    %v383 = vshrl.u32 %v382, 7
    %v384 = vsub.s32 1, %v383
    %v385 = vrot.slane %v376, %v384
    %v388 = vadd.f32 %v374, %v381
    %v389 = vadd.f32 %v375, %v385
    %v390 = vmul.f32 %v388, 0.5
    %v391 = vmul.f32 %v389, 0.5
    %v392 = vtanh.pop %v390
    %v393 = vtanh.pop %v391
    %v394 = vadd.f32 %v392, 1.0
    %v395 = vadd.f32 %v393, 1.0
    %v396 = vmul.f32 %v394, 0.5
    %v397 = vmul.f32 %v395, 0.5
    %v398 = vmul.f32 %v397, %v81
    %v399 = vld [vmem:[#allocation8] sm:$0xff]
    %v400 = vld [vmem:[#allocation8 + $0x8] sm:$0xff]
    %v401 = vld [vmem:[#allocation8 + $0x10] sm:$0xff]
    %v402 = vld [vmem:[#allocation8 + $0x18] sm:$0xff]
    %v403 = vld [vmem:[#allocation8 + $0x20] sm:$0xff]
    %v404 = vld [vmem:[#allocation8 + $0x28] sm:$0xff]
    %v405 = vld [vmem:[#allocation8 + $0x30] sm:$0xff]
    %v406 = vld [vmem:[#allocation8 + $0x38] sm:$0xff]
    %v407 = vld [vmem:[#allocation8 + $0x40] sm:$0xff]
    %v408 = vld [vmem:[#allocation8 + $0x48] sm:$0xff]
    %v409 = vld [vmem:[#allocation8 + $0x50] sm:$0xff]
    %v410 = vld [vmem:[#allocation8 + $0x58] sm:$0xff]
    %v411 = vld [vmem:[#allocation8 + $0x60] sm:$0xff]
    %v412 = vld [vmem:[#allocation8 + $0x68] sm:$0xff]
    %v413 = vld [vmem:[#allocation8 + $0x70] sm:$0xff]
    %v414 = vld [vmem:[#allocation8 + $0x78] sm:$0xff]
    %415 = vmatprep.subr.mxu0 0.0
    %416 = vmatpush1.msra.mxu0 %v414
    %417 = vmatprep.subr.mxu0 0.0
    %418 = vmatpush1.msra.mxu0 %v413
    %419 = vmatprep.subr.mxu0 0.0
    %420 = vmatpush1.msra.mxu0 %v412
    %421 = vmatprep.subr.mxu0 0.0
    %422 = vmatpush1.msra.mxu0 %v411
    %423 = vmatprep.subr.mxu0 0.0
    %424 = vmatpush1.msra.mxu0 %v410
    %425 = vmatprep.subr.mxu0 0.0
    %426 = vmatpush1.msra.mxu0 %v409
    %427 = vmatprep.subr.mxu0 0.0
    %428 = vmatpush1.msra.mxu0 %v408
    %429 = vmatprep.subr.mxu0 0.0
    %430 = vmatpush1.msra.mxu0 %v407
    %431 = vmatprep.subr.mxu0 0.0
    %432 = vmatpush1.msra.mxu0 %v406
    %433 = vmatprep.subr.mxu0 0.0
    %434 = vmatpush1.msra.mxu0 %v405
    %435 = vmatprep.subr.mxu0 0.0
    %436 = vmatpush1.msra.mxu0 %v404
    %437 = vmatprep.subr.mxu0 0.0
    %438 = vmatpush1.msra.mxu0 %v403
    %439 = vmatprep.subr.mxu0 0.0
    %440 = vmatpush1.msra.mxu0 %v402
    %441 = vmatprep.subr.mxu0 0.0
    %442 = vmatpush1.msra.mxu0 %v401
    %443 = vmatprep.subr.mxu0 0.0
    %444 = vmatpush1.msra.mxu0 %v400
    %445 = vmatprep.subr.mxu0 0.0
    %446 = vmatpush1.msra.mxu0 %v399
    %447 = vmatprep.subr.mxu0 0.0
    %448 = vmatpush2.msra.mxu0 0.0
    %449 = vmatprep.subr.mxu0 0.0
    %450 = vmatpush2.msra.mxu0 0.0
    %451 = vmatprep.subr.mxu0 0.0
    %452 = vmatpush2.msra.mxu0 0.0
    %453 = vmatprep.subr.mxu0 0.0
    %454 = vmatpush2.msra.mxu0 0.0
    %455 = vmatprep.subr.mxu0 0.0
    %456 = vmatpush2.msra.mxu0 0.0
    %457 = vmatprep.subr.mxu0 0.0
    %458 = vmatpush2.msra.mxu0 0.0
    %459 = vmatprep.subr.mxu0 0.0
    %460 = vmatpush2.msra.mxu0 0.0
    %461 = vmatprep.subr.mxu0 0.0
    %462 = vmatpush2.msra.mxu0 0.0
    %463 = vmatprep.subr.mxu0 0.0
    %464 = vmatpush2.msra.mxu0 0.0
    %465 = vmatprep.subr.mxu0 0.0
    %466 = vmatpush2.msra.mxu0 0.0
    %467 = vmatprep.subr.mxu0 0.0
    %468 = vmatpush2.msra.mxu0 0.0
    %469 = vmatprep.subr.mxu0 0.0
    %470 = vmatpush2.msra.mxu0 0.0
    %471 = vmatprep.subr.mxu0 0.0
    %472 = vmatpush2.msra.mxu0 0.0
    %473 = vmatprep.subr.mxu0 0.0
    %474 = vmatpush2.msra.mxu0 0.0
    %475 = vmatprep.subr.mxu0 0.0
    %476 = vmatpush2.msra.mxu0 0.0
    %477 = vmatprep.subr.mxu0 0.0
    %478 = vmatpush2.msra.mxu0 0.0
    %479 = vmatprep.mubr.f32.mxu0 0.0
    %480 = vmatmul.mubr.f32.gmra.mxu0 %v398
    %v481 = vpop.f32.mrf.mxu0
    %v482 = vadd.f32 0.0, %v481
    %v483 = vpop.f32.mrf.mxu0
    %484 = vdwg.mxu0
    %v485 = vadd.f32 %v268, %v482
    %v486 = vld [vmem:[%s6] sm:$0x1]
    %v488 = vlaneseq
    %v489 = vshrl.u32 %v488, 7
    %v490 = vsub.s32 0, %v489
    %v491 = vrot.slane %v486, %v490
    %v493 = vadd.f32 %v485, %v491
    %v494 = vtanh.pop %v493
    %v495 = vsub.f32 %v81, %v494
    %v496 = vmul.f32 %v396, %v495
    %v497 = vadd.f32 %v494, %v496
    %498 = vst [vmem:[#allocation10] sm:$0xff] %v497
    // Predicated region
    $region46: #{tpu_custom_call.1} parent=1 // pred_check
      _
    $region47: #{tpu_custom_call.1} parent=1 // pred_check_branch
      %500 = sbr.rel (0) target = $region49
    $region48: #{tpu_custom_call.1} parent=1 // pred_region
      %s502 = ssub.s32 128, 128
      %503 = vsyncadd [#allocation4], %s502
      %s505 = sshll.u32 [#allocation10], 4
      %s506 = int_to_ptr.vmem [resolvable:$true] %s505
      %508 = dma.vmem_to_hbm [thread:$0]  %s506, 128, %s7, [#allocation4]
    $region49: #{tpu_custom_call.1} parent=1 // pred_fallthru
      _
    // Predicated region
    $region50: #{tpu_custom_call.1} parent=1 // pred_check
      _
    $region51: #{tpu_custom_call.1} parent=1 // pred_check_branch
      %510 = sbr.rel (0) target = $region53
    $region52: #{tpu_custom_call.1} parent=1 // pred_region
      %511 = dma.done [#allocation4], 128
    $region53: #{tpu_custom_call.1} parent=1 // pred_fallthru
      _
    %512 = vsyncpa [#allocation3], 1
    %513 = vsyncpa [#allocation6], 1
    %514 = vsyncpa [#allocation9], 1
    %515 = vsyncpa [#allocation4], 1

// kernel: tpu_custom_call.1
$region0: #{tpu_custom_call.1}
  #allocation0 [shape = 'u32[]', space=smem, size = 0x4, offset = 0x4, fixed_abs, tag = 'smem constant byte address 0x4 - core index']
  #allocation1 [shape = 'u32[144,128]{1,0:T(1,128)}', space=vmem, size = 0x12000, scoped, tag = 'internal scratch']
  %s0 = inlined_call_operand.vmem [shape: f32[8,128], index: 0, kind: input, shape index: {}]
  %s1 = inlined_call_operand.hbm [shape: f32[8,128], index: 1, kind: input, shape index: {}, may-alias: {1,7}]
  %s2 = inlined_call_operand.hbm [shape: f32[128,384], index: 2, kind: input, shape index: {}]
  %s3 = inlined_call_operand.hbm [shape: f32[128,256], index: 3, kind: input, shape index: {}]
  %s4 = inlined_call_operand.hbm [shape: f32[128,128], index: 4, kind: input, shape index: {}]
  %s5 = inlined_call_operand.vmem [shape: f32[1,256], index: 5, kind: input, shape index: {}]
  %s6 = inlined_call_operand.vmem [shape: f32[1,128], index: 6, kind: input, shape index: {}]
  %s7 = inlined_call_operand.hbm [shape: f32[8,128], index: 7, kind: output, shape index: {}, may-alias: {1,7}]
  %s8 = sld [smem:[#allocation0]]
  $region54: #{tpu_custom_call.1} parent=0
    _
  %s10 = ssub.s32 1, %s8
  %s11 = scalar_select 0, %s10, %s8
  $region1: #{tpu_custom_call.1} parent=0
    #allocation2 [shape = 'u8[4096]{0}', space=vmem, size = 0x1000, scoped, tag = 'input window, operand 1, single buffered']
    #allocation3 [shape = 's32[1]{0}', space=sflag, size = 0x4, scoped, tag = 'scoped memory for tpu_custom_call.1']
    #allocation4 [shape = 's32[1]{0}', space=sflag, size = 0x4, scoped, tag = 'scoped memory for tpu_custom_call.1']
    #allocation5 [shape = 'u8[196608]{0}', space=vmem, size = 0x30000, scoped, tag = 'input window, operand 2, single buffered']
    #allocation6 [shape = 's32[1]{0}', space=sflag, size = 0x4, scoped, tag = 'scoped memory for tpu_custom_call.1']
    #allocation7 [shape = 'u8[131072]{0}', space=vmem, size = 0x20000, scoped, tag = 'input window, operand 3, single buffered']
    #allocation8 [shape = 'u8[65536]{0}', space=vmem, size = 0x10000, scoped, tag = 'input window, operand 4, single buffered']
    #allocation9 [shape = 's32[1]{0}', space=sflag, size = 0x4, scoped, tag = 'scoped memory for tpu_custom_call.1']
    #allocation10 [shape = 'u8[4096]{0}', space=vmem, size = 0x1000, scoped, tag = 'output window, operand 0, single buffered']
    %12 = vsyncpa [#allocation3], 0
    %13 = vsyncpa [#allocation6], 0
    %14 = vsyncpa [#allocation9], 0
    %15 = vsyncpa [#allocation4], 0
    // Predicated region
    $region2: #{tpu_custom_call.1} parent=1 // pred_check
      _
    $region3: #{tpu_custom_call.1} parent=1 // pred_check_branch
      %17 = sbr.rel (0) target = $region5
    $region4: #{tpu_custom_call.1} parent=1 // pred_region
      _
    $region5: #{tpu_custom_call.1} parent=1 // pred_fallthru
      _
    // Predicated region
    $region6: #{tpu_custom_call.1} parent=1 // pred_check
      _
    $region7: #{tpu_custom_call.1} parent=1 // pred_check_branch
      %19 = sbr.rel (0) target = $region9
    $region8: #{tpu_custom_call.1} parent=1 // pred_region
      %s21 = ssub.s32 128, 128
      %22 = vsyncadd [#allocation3], %s21
      %s24 = sshll.u32 [#allocation2], 4
      %s25 = int_to_ptr.vmem [resolvable:$true] %s24
      %27 = dma.hbm_to_vmem [thread:$0]  %s1, 128, %s25, [#allocation3]
    $region9: #{tpu_custom_call.1} parent=1 // pred_fallthru
      _
    // Predicated region
    $region10: #{tpu_custom_call.1} parent=1 // pred_check
      _
    $region11: #{tpu_custom_call.1} parent=1 // pred_check_branch
      %29 = sbr.rel (0) target = $region13
    $region12: #{tpu_custom_call.1} parent=1 // pred_region
      %s31 = ssub.s32 6144, 6144
      %32 = vsyncadd [#allocation6], %s31
      %s33 = sshll.u32 [#allocation5], 4
      %s34 = int_to_ptr.vmem [resolvable:$true] %s33
      %39 = dma.hbm_to_vmem [thread:$0]  %s2, 6144, %s34, [#allocation6], 384, 384, 24
    $region13: #{tpu_custom_call.1} parent=1 // pred_fallthru
      _
    // Predicated region
    $region14: #{tpu_custom_call.1} parent=1 // pred_check
      _
    $region15: #{tpu_custom_call.1} parent=1 // pred_check_branch
      %41 = sbr.rel (0) target = $region17
    $region16: #{tpu_custom_call.1} parent=1 // pred_region
      %s43 = ssub.s32 4096, 4096
      %44 = vsyncadd [#allocation6], %s43
      %s45 = sshll.u32 [#allocation7], 4
      %s46 = int_to_ptr.vmem [resolvable:$true] %s45
      %51 = dma.hbm_to_vmem [thread:$0]  %s3, 4096, %s46, [#allocation6], 256, 256, 16
    $region17: #{tpu_custom_call.1} parent=1 // pred_fallthru
      _
    // Predicated region
    $region18: #{tpu_custom_call.1} parent=1 // pred_check
      _
    $region19: #{tpu_custom_call.1} parent=1 // pred_check_branch
      %53 = sbr.rel (0) target = $region21
    $region20: #{tpu_custom_call.1} parent=1 // pred_region
      %s55 = ssub.s32 2048, 2048
      %56 = vsyncadd [#allocation9], %s55
      %s57 = sshll.u32 [#allocation8], 4
      %s58 = int_to_ptr.vmem [resolvable:$true] %s57
      %63 = dma.hbm_to_vmem [thread:$0]  %s4, 2048, %s58, [#allocation9], 128, 128, 8
    $region21: #{tpu_custom_call.1} parent=1 // pred_fallthru
      _
    // Predicated region
    $region22: #{tpu_custom_call.1} parent=1 // pred_check
      _
    $region23: #{tpu_custom_call.1} parent=1 // pred_check_branch
      %65 = sbr.rel (0) target = $region25
    $region24: #{tpu_custom_call.1} parent=1 // pred_region
      _
    $region25: #{tpu_custom_call.1} parent=1 // pred_fallthru
      _
    // Predicated region
    $region26: #{tpu_custom_call.1} parent=1 // pred_check
      _
    $region27: #{tpu_custom_call.1} parent=1 // pred_check_branch
      %67 = sbr.rel (0) target = $region29
    $region28: #{tpu_custom_call.1} parent=1 // pred_region
      _
    $region29: #{tpu_custom_call.1} parent=1 // pred_fallthru
      _
    // Predicated region
    $region30: #{tpu_custom_call.1} parent=1 // pred_check
      _
    $region31: #{tpu_custom_call.1} parent=1 // pred_check_branch
      %69 = sbr.rel (0) target = $region33
    $region32: #{tpu_custom_call.1} parent=1 // pred_region
      %70 = dma.done [#allocation3], 128
    $region33: #{tpu_custom_call.1} parent=1 // pred_fallthru
      _
    // Predicated region
    $region34: #{tpu_custom_call.1} parent=1 // pred_check
      _
    $region35: #{tpu_custom_call.1} parent=1 // pred_check_branch
      %72 = sbr.rel (0) target = $region37
    $region36: #{tpu_custom_call.1} parent=1 // pred_region
      %73 = dma.done [#allocation6], 6144
    $region37: #{tpu_custom_call.1} parent=1 // pred_fallthru
      _
    // Predicated region
    $region38: #{tpu_custom_call.1} parent=1 // pred_check
      _
    $region39: #{tpu_custom_call.1} parent=1 // pred_check_branch
      %75 = sbr.rel (0) target = $region41
    $region40: #{tpu_custom_call.1} parent=1 // pred_region
      %76 = dma.done [#allocation6], 4096
    $region41: #{tpu_custom_call.1} parent=1 // pred_fallthru
      _
    // Predicated region
    $region42: #{tpu_custom_call.1} parent=1 // pred_check
      _
    $region43: #{tpu_custom_call.1} parent=1 // pred_check_branch
      %78 = sbr.rel (0) target = $region45
    $region44: #{tpu_custom_call.1} parent=1 // pred_region
      %79 = dma.done [#allocation9], 2048
    $region45: #{tpu_custom_call.1} parent=1 // pred_fallthru
      _
    %v80 = vld [vmem:[%s0] sm:$0xff]
    %v81 = vld [vmem:[#allocation2] sm:$0xff]
    %v82 = vld [vmem:[#allocation5] sm:$0xff]
    %v83 = vld [vmem:[#allocation5 + $0x8] sm:$0xff]
    %v84 = vld [vmem:[#allocation5 + $0x10] sm:$0xff]
    %v85 = vld [vmem:[#allocation5 + $0x18] sm:$0xff]
    %v86 = vld [vmem:[#allocation5 + $0x20] sm:$0xff]
    %v87 = vld [vmem:[#allocation5 + $0x28] sm:$0xff]
    %v88 = vld [vmem:[#allocation5 + $0x30] sm:$0xff]
    %v89 = vld [vmem:[#allocation5 + $0x38] sm:$0xff]
    %v90 = vld [vmem:[#allocation5 + $0x40] sm:$0xff]
    %v91 = vld [vmem:[#allocation5 + $0x48] sm:$0xff]
    %v92 = vld [vmem:[#allocation5 + $0x50] sm:$0xff]
    %v93 = vld [vmem:[#allocation5 + $0x58] sm:$0xff]
    %v94 = vld [vmem:[#allocation5 + $0x60] sm:$0xff]
    %v95 = vld [vmem:[#allocation5 + $0x68] sm:$0xff]
    %v96 = vld [vmem:[#allocation5 + $0x70] sm:$0xff]
    %v97 = vld [vmem:[#allocation5 + $0x78] sm:$0xff]
    %v98 = vld [vmem:[#allocation5 + $0x80] sm:$0xff]
    %v99 = vld [vmem:[#allocation5 + $0x88] sm:$0xff]
    %v100 = vld [vmem:[#allocation5 + $0x90] sm:$0xff]
    %v101 = vld [vmem:[#allocation5 + $0x98] sm:$0xff]
    %v102 = vld [vmem:[#allocation5 + $0xa0] sm:$0xff]
    %v103 = vld [vmem:[#allocation5 + $0xa8] sm:$0xff]
    %v104 = vld [vmem:[#allocation5 + $0xb0] sm:$0xff]
    %v105 = vld [vmem:[#allocation5 + $0xb8] sm:$0xff]
    %v106 = vld [vmem:[#allocation5 + $0xc0] sm:$0xff]
    %v107 = vld [vmem:[#allocation5 + $0xc8] sm:$0xff]
    %v108 = vld [vmem:[#allocation5 + $0xd0] sm:$0xff]
    %v109 = vld [vmem:[#allocation5 + $0xd8] sm:$0xff]
    %v110 = vld [vmem:[#allocation5 + $0xe0] sm:$0xff]
    %v111 = vld [vmem:[#allocation5 + $0xe8] sm:$0xff]
    %v112 = vld [vmem:[#allocation5 + $0xf0] sm:$0xff]
    %v113 = vld [vmem:[#allocation5 + $0xf8] sm:$0xff]
    %v114 = vld [vmem:[#allocation5 + $0x100] sm:$0xff]
    %v115 = vld [vmem:[#allocation5 + $0x108] sm:$0xff]
    %v116 = vld [vmem:[#allocation5 + $0x110] sm:$0xff]
    %v117 = vld [vmem:[#allocation5 + $0x118] sm:$0xff]
    %v118 = vld [vmem:[#allocation5 + $0x120] sm:$0xff]
    %v119 = vld [vmem:[#allocation5 + $0x128] sm:$0xff]
    %v120 = vld [vmem:[#allocation5 + $0x130] sm:$0xff]
    %v121 = vld [vmem:[#allocation5 + $0x138] sm:$0xff]
    %v122 = vld [vmem:[#allocation5 + $0x140] sm:$0xff]
    %v123 = vld [vmem:[#allocation5 + $0x148] sm:$0xff]
    %v124 = vld [vmem:[#allocation5 + $0x150] sm:$0xff]
    %v125 = vld [vmem:[#allocation5 + $0x158] sm:$0xff]
    %v126 = vld [vmem:[#allocation5 + $0x160] sm:$0xff]
    %v127 = vld [vmem:[#allocation5 + $0x168] sm:$0xff]
    %v128 = vld [vmem:[#allocation5 + $0x170] sm:$0xff]
    %v129 = vld [vmem:[#allocation5 + $0x178] sm:$0xff]
    %130 = vmatprep.subr.mxu0 %v128
    %131 = vmatpush1.msra.mxu0 %v127
    %132 = vmatprep.subr.mxu0 %v125
    %133 = vmatpush1.msra.mxu0 %v124
    %134 = vmatprep.subr.mxu0 %v122
    %135 = vmatpush1.msra.mxu0 %v121
    %136 = vmatprep.subr.mxu0 %v119
    %137 = vmatpush1.msra.mxu0 %v118
    %138 = vmatprep.subr.mxu0 %v116
    %139 = vmatpush1.msra.mxu0 %v115
    %140 = vmatprep.subr.mxu0 %v113
    %141 = vmatpush1.msra.mxu0 %v112
    %142 = vmatprep.subr.mxu0 %v110
    %143 = vmatpush1.msra.mxu0 %v109
    %144 = vmatprep.subr.mxu0 %v107
    %145 = vmatpush1.msra.mxu0 %v106
    %146 = vmatprep.subr.mxu0 %v104
    %147 = vmatpush1.msra.mxu0 %v103
    %148 = vmatprep.subr.mxu0 %v101
    %149 = vmatpush1.msra.mxu0 %v100
    %150 = vmatprep.subr.mxu0 %v98
    %151 = vmatpush1.msra.mxu0 %v97
    %152 = vmatprep.subr.mxu0 %v95
    %153 = vmatpush1.msra.mxu0 %v94
    %154 = vmatprep.subr.mxu0 %v92
    %155 = vmatpush1.msra.mxu0 %v91
    %156 = vmatprep.subr.mxu0 %v89
    %157 = vmatpush1.msra.mxu0 %v88
    %158 = vmatprep.subr.mxu0 %v86
    %159 = vmatpush1.msra.mxu0 %v85
    %160 = vmatprep.subr.mxu0 %v83
    %161 = vmatpush1.msra.mxu0 %v82
    %162 = vmatprep.subr.mxu0 0.0
    %163 = vmatpush2.msra.mxu0 0.0
    %164 = vmatprep.subr.mxu0 0.0
    %165 = vmatpush2.msra.mxu0 0.0
    %166 = vmatprep.subr.mxu0 0.0
    %167 = vmatpush2.msra.mxu0 0.0
    %168 = vmatprep.subr.mxu0 0.0
    %169 = vmatpush2.msra.mxu0 0.0
    %170 = vmatprep.subr.mxu0 0.0
    %171 = vmatpush2.msra.mxu0 0.0
    %172 = vmatprep.subr.mxu0 0.0
    %173 = vmatpush2.msra.mxu0 0.0
    %174 = vmatprep.subr.mxu0 0.0
    %175 = vmatpush2.msra.mxu0 0.0
    %176 = vmatprep.subr.mxu0 0.0
    %177 = vmatpush2.msra.mxu0 0.0
    %178 = vmatprep.subr.mxu0 0.0
    %179 = vmatpush2.msra.mxu0 0.0
    %180 = vmatprep.subr.mxu0 0.0
    %181 = vmatpush2.msra.mxu0 0.0
    %182 = vmatprep.subr.mxu0 0.0
    %183 = vmatpush2.msra.mxu0 0.0
    %184 = vmatprep.subr.mxu0 0.0
    %185 = vmatpush2.msra.mxu0 0.0
    %186 = vmatprep.subr.mxu0 0.0
    %187 = vmatpush2.msra.mxu0 0.0
    %188 = vmatprep.subr.mxu0 0.0
    %189 = vmatpush2.msra.mxu0 0.0
    %190 = vmatprep.subr.mxu0 0.0
    %191 = vmatpush2.msra.mxu0 0.0
    %192 = vmatprep.subr.mxu0 0.0
    %193 = vmatpush2.msra.mxu0 0.0
    %194 = vmatprep.mubr.f32.mxu0 0.0
    %195 = vmatmul.mubr.f32.gmra.mxu0 %v80
    %v196 = vpop.f32.mrf.mxu0
    %v197 = vadd.f32 0.0, %v196
    %v198 = vpop.f32.mrf.mxu0
    %v199 = vadd.f32 0.0, %v198
    %200 = vdwg.mxu0
    %201 = vmatprep.subr.mxu0 0.0
    %202 = vmatpush1.msra.mxu0 %v129
    %203 = vmatprep.subr.mxu0 0.0
    %204 = vmatpush1.msra.mxu0 %v126
    %205 = vmatprep.subr.mxu0 0.0
    %206 = vmatpush1.msra.mxu0 %v123
    %207 = vmatprep.subr.mxu0 0.0
    %208 = vmatpush1.msra.mxu0 %v120
    %209 = vmatprep.subr.mxu0 0.0
    %210 = vmatpush1.msra.mxu0 %v117
    %211 = vmatprep.subr.mxu0 0.0
    %212 = vmatpush1.msra.mxu0 %v114
    %213 = vmatprep.subr.mxu0 0.0
    %214 = vmatpush1.msra.mxu0 %v111
    %215 = vmatprep.subr.mxu0 0.0
    %216 = vmatpush1.msra.mxu0 %v108
    %217 = vmatprep.subr.mxu0 0.0
    %218 = vmatpush1.msra.mxu0 %v105
    %219 = vmatprep.subr.mxu0 0.0
    %220 = vmatpush1.msra.mxu0 %v102
    %221 = vmatprep.subr.mxu0 0.0
    %222 = vmatpush1.msra.mxu0 %v99
    %223 = vmatprep.subr.mxu0 0.0
    %224 = vmatpush1.msra.mxu0 %v96
    %225 = vmatprep.subr.mxu0 0.0
    %226 = vmatpush1.msra.mxu0 %v93
    %227 = vmatprep.subr.mxu0 0.0
    %228 = vmatpush1.msra.mxu0 %v90
    %229 = vmatprep.subr.mxu0 0.0
    %230 = vmatpush1.msra.mxu0 %v87
    %231 = vmatprep.subr.mxu0 0.0
    %232 = vmatpush1.msra.mxu0 %v84
    %233 = vmatprep.subr.mxu0 0.0
    %234 = vmatpush2.msra.mxu0 0.0
    %235 = vmatprep.subr.mxu0 0.0
    %236 = vmatpush2.msra.mxu0 0.0
    %237 = vmatprep.subr.mxu0 0.0
    %238 = vmatpush2.msra.mxu0 0.0
    %239 = vmatprep.subr.mxu0 0.0
    %240 = vmatpush2.msra.mxu0 0.0
    %241 = vmatprep.subr.mxu0 0.0
    %242 = vmatpush2.msra.mxu0 0.0
    %243 = vmatprep.subr.mxu0 0.0
    %244 = vmatpush2.msra.mxu0 0.0
    %245 = vmatprep.subr.mxu0 0.0
    %246 = vmatpush2.msra.mxu0 0.0
    %247 = vmatprep.subr.mxu0 0.0
    %248 = vmatpush2.msra.mxu0 0.0
    %249 = vmatprep.subr.mxu0 0.0
    %250 = vmatpush2.msra.mxu0 0.0
    %251 = vmatprep.subr.mxu0 0.0
    %252 = vmatpush2.msra.mxu0 0.0
    %253 = vmatprep.subr.mxu0 0.0
    %254 = vmatpush2.msra.mxu0 0.0
    %255 = vmatprep.subr.mxu0 0.0
    %256 = vmatpush2.msra.mxu0 0.0
    %257 = vmatprep.subr.mxu0 0.0
    %258 = vmatpush2.msra.mxu0 0.0
    %259 = vmatprep.subr.mxu0 0.0
    %260 = vmatpush2.msra.mxu0 0.0
    %261 = vmatprep.subr.mxu0 0.0
    %262 = vmatpush2.msra.mxu0 0.0
    %263 = vmatprep.subr.mxu0 0.0
    %264 = vmatpush2.msra.mxu0 0.0
    %265 = vmatprep.mubr.f32.mxu0 0.0
    %266 = vmatmul.mubr.f32.gmra.mxu0 %v80
    %v267 = vpop.f32.mrf.mxu0
    %v268 = vadd.f32 0.0, %v267
    %v269 = vpop.f32.mrf.mxu0
    %270 = vdwg.mxu0
    %v271 = vld [vmem:[#allocation7] sm:$0xff]
    %v272 = vld [vmem:[#allocation7 + $0x8] sm:$0xff]
    %v273 = vld [vmem:[#allocation7 + $0x10] sm:$0xff]
    %v274 = vld [vmem:[#allocation7 + $0x18] sm:$0xff]
    %v275 = vld [vmem:[#allocation7 + $0x20] sm:$0xff]
    %v276 = vld [vmem:[#allocation7 + $0x28] sm:$0xff]
    %v277 = vld [vmem:[#allocation7 + $0x30] sm:$0xff]
    %v278 = vld [vmem:[#allocation7 + $0x38] sm:$0xff]
    %v279 = vld [vmem:[#allocation7 + $0x40] sm:$0xff]
    %v280 = vld [vmem:[#allocation7 + $0x48] sm:$0xff]
    %v281 = vld [vmem:[#allocation7 + $0x50] sm:$0xff]
    %v282 = vld [vmem:[#allocation7 + $0x58] sm:$0xff]
    %v283 = vld [vmem:[#allocation7 + $0x60] sm:$0xff]
    %v284 = vld [vmem:[#allocation7 + $0x68] sm:$0xff]
    %v285 = vld [vmem:[#allocation7 + $0x70] sm:$0xff]
    %v286 = vld [vmem:[#allocation7 + $0x78] sm:$0xff]
    %v287 = vld [vmem:[#allocation7 + $0x80] sm:$0xff]
    %v288 = vld [vmem:[#allocation7 + $0x88] sm:$0xff]
    %v289 = vld [vmem:[#allocation7 + $0x90] sm:$0xff]
    %v290 = vld [vmem:[#allocation7 + $0x98] sm:$0xff]
    %v291 = vld [vmem:[#allocation7 + $0xa0] sm:$0xff]
    %v292 = vld [vmem:[#allocation7 + $0xa8] sm:$0xff]
    %v293 = vld [vmem:[#allocation7 + $0xb0] sm:$0xff]
    %v294 = vld [vmem:[#allocation7 + $0xb8] sm:$0xff]
    %v295 = vld [vmem:[#allocation7 + $0xc0] sm:$0xff]
    %v296 = vld [vmem:[#allocation7 + $0xc8] sm:$0xff]
    %v297 = vld [vmem:[#allocation7 + $0xd0] sm:$0xff]
    %v298 = vld [vmem:[#allocation7 + $0xd8] sm:$0xff]
    %v299 = vld [vmem:[#allocation7 + $0xe0] sm:$0xff]
    %v300 = vld [vmem:[#allocation7 + $0xe8] sm:$0xff]
    %v301 = vld [vmem:[#allocation7 + $0xf0] sm:$0xff]
    %v302 = vld [vmem:[#allocation7 + $0xf8] sm:$0xff]
    %303 = vmatprep.subr.mxu0 %v302
    %304 = vmatpush1.msra.mxu0 %v301
    %305 = vmatprep.subr.mxu0 %v300
    %306 = vmatpush1.msra.mxu0 %v299
    %307 = vmatprep.subr.mxu0 %v298
    %308 = vmatpush1.msra.mxu0 %v297
    %309 = vmatprep.subr.mxu0 %v296
    %310 = vmatpush1.msra.mxu0 %v295
    %311 = vmatprep.subr.mxu0 %v294
    %312 = vmatpush1.msra.mxu0 %v293
    %313 = vmatprep.subr.mxu0 %v292
    %314 = vmatpush1.msra.mxu0 %v291
    %315 = vmatprep.subr.mxu0 %v290
    %316 = vmatpush1.msra.mxu0 %v289
    %317 = vmatprep.subr.mxu0 %v288
    %318 = vmatpush1.msra.mxu0 %v287
    %319 = vmatprep.subr.mxu0 %v286
    %320 = vmatpush1.msra.mxu0 %v285
    %321 = vmatprep.subr.mxu0 %v284
    %322 = vmatpush1.msra.mxu0 %v283
    %323 = vmatprep.subr.mxu0 %v282
    %324 = vmatpush1.msra.mxu0 %v281
    %325 = vmatprep.subr.mxu0 %v280
    %326 = vmatpush1.msra.mxu0 %v279
    %327 = vmatprep.subr.mxu0 %v278
    %328 = vmatpush1.msra.mxu0 %v277
    %329 = vmatprep.subr.mxu0 %v276
    %330 = vmatpush1.msra.mxu0 %v275
    %331 = vmatprep.subr.mxu0 %v274
    %332 = vmatpush1.msra.mxu0 %v273
    %333 = vmatprep.subr.mxu0 %v272
    %334 = vmatpush1.msra.mxu0 %v271
    %335 = vmatprep.subr.mxu0 0.0
    %336 = vmatpush2.msra.mxu0 0.0
    %337 = vmatprep.subr.mxu0 0.0
    %338 = vmatpush2.msra.mxu0 0.0
    %339 = vmatprep.subr.mxu0 0.0
    %340 = vmatpush2.msra.mxu0 0.0
    %341 = vmatprep.subr.mxu0 0.0
    %342 = vmatpush2.msra.mxu0 0.0
    %343 = vmatprep.subr.mxu0 0.0
    %344 = vmatpush2.msra.mxu0 0.0
    %345 = vmatprep.subr.mxu0 0.0
    %346 = vmatpush2.msra.mxu0 0.0
    %347 = vmatprep.subr.mxu0 0.0
    %348 = vmatpush2.msra.mxu0 0.0
    %349 = vmatprep.subr.mxu0 0.0
    %350 = vmatpush2.msra.mxu0 0.0
    %351 = vmatprep.subr.mxu0 0.0
    %352 = vmatpush2.msra.mxu0 0.0
    %353 = vmatprep.subr.mxu0 0.0
    %354 = vmatpush2.msra.mxu0 0.0
    %355 = vmatprep.subr.mxu0 0.0
    %356 = vmatpush2.msra.mxu0 0.0
    %357 = vmatprep.subr.mxu0 0.0
    %358 = vmatpush2.msra.mxu0 0.0
    %359 = vmatprep.subr.mxu0 0.0
    %360 = vmatpush2.msra.mxu0 0.0
    %361 = vmatprep.subr.mxu0 0.0
    %362 = vmatpush2.msra.mxu0 0.0
    %363 = vmatprep.subr.mxu0 0.0
    %364 = vmatpush2.msra.mxu0 0.0
    %365 = vmatprep.subr.mxu0 0.0
    %366 = vmatpush2.msra.mxu0 0.0
    %367 = vmatprep.mubr.f32.mxu0 0.0
    %368 = vmatmul.mubr.f32.gmra.mxu0 %v81
    %v369 = vpop.f32.mrf.mxu0
    %v370 = vadd.f32 0.0, %v369
    %v371 = vpop.f32.mrf.mxu0
    %v372 = vadd.f32 0.0, %v371
    %373 = vdwg.mxu0
    %v374 = vadd.f32 %v197, %v370
    %v375 = vadd.f32 %v199, %v372
    %v376 = vld [vmem:[%s5] sm:$0x3]
    %v378 = vlaneseq
    %v379 = vshrl.u32 %v378, 7
    %v380 = vsub.s32 0, %v379
    %v381 = vrot.slane %v376, %v380
    %v382 = vlaneseq
    %v383 = vshrl.u32 %v382, 7
    %v384 = vsub.s32 1, %v383
    %v385 = vrot.slane %v376, %v384
    %v388 = vadd.f32 %v374, %v381
    %v389 = vadd.f32 %v375, %v385
    %v390 = vmul.f32 %v388, 0.5
    %v391 = vmul.f32 %v389, 0.5
    %v392 = vtanh.pop %v390
    %v393 = vtanh.pop %v391
    %v394 = vadd.f32 %v392, 1.0
    %v395 = vadd.f32 %v393, 1.0
    %v396 = vmul.f32 %v394, 0.5
    %v397 = vmul.f32 %v395, 0.5
    %v398 = vmul.f32 %v397, %v81
    %v399 = vld [vmem:[#allocation8] sm:$0xff]
    %v400 = vld [vmem:[#allocation8 + $0x8] sm:$0xff]
    %v401 = vld [vmem:[#allocation8 + $0x10] sm:$0xff]
    %v402 = vld [vmem:[#allocation8 + $0x18] sm:$0xff]
    %v403 = vld [vmem:[#allocation8 + $0x20] sm:$0xff]
    %v404 = vld [vmem:[#allocation8 + $0x28] sm:$0xff]
    %v405 = vld [vmem:[#allocation8 + $0x30] sm:$0xff]
    %v406 = vld [vmem:[#allocation8 + $0x38] sm:$0xff]
    %v407 = vld [vmem:[#allocation8 + $0x40] sm:$0xff]
    %v408 = vld [vmem:[#allocation8 + $0x48] sm:$0xff]
    %v409 = vld [vmem:[#allocation8 + $0x50] sm:$0xff]
    %v410 = vld [vmem:[#allocation8 + $0x58] sm:$0xff]
    %v411 = vld [vmem:[#allocation8 + $0x60] sm:$0xff]
    %v412 = vld [vmem:[#allocation8 + $0x68] sm:$0xff]
    %v413 = vld [vmem:[#allocation8 + $0x70] sm:$0xff]
    %v414 = vld [vmem:[#allocation8 + $0x78] sm:$0xff]
    %415 = vmatprep.subr.mxu0 0.0
    %416 = vmatpush1.msra.mxu0 %v414
    %417 = vmatprep.subr.mxu0 0.0
    %418 = vmatpush1.msra.mxu0 %v413
    %419 = vmatprep.subr.mxu0 0.0
    %420 = vmatpush1.msra.mxu0 %v412
    %421 = vmatprep.subr.mxu0 0.0
    %422 = vmatpush1.msra.mxu0 %v411
    %423 = vmatprep.subr.mxu0 0.0
    %424 = vmatpush1.msra.mxu0 %v410
    %425 = vmatprep.subr.mxu0 0.0
    %426 = vmatpush1.msra.mxu0 %v409
    %427 = vmatprep.subr.mxu0 0.0
    %428 = vmatpush1.msra.mxu0 %v408
    %429 = vmatprep.subr.mxu0 0.0
    %430 = vmatpush1.msra.mxu0 %v407
    %431 = vmatprep.subr.mxu0 0.0
    %432 = vmatpush1.msra.mxu0 %v406
    %433 = vmatprep.subr.mxu0 0.0
    %434 = vmatpush1.msra.mxu0 %v405
    %435 = vmatprep.subr.mxu0 0.0
    %436 = vmatpush1.msra.mxu0 %v404
    %437 = vmatprep.subr.mxu0 0.0
    %438 = vmatpush1.msra.mxu0 %v403
    %439 = vmatprep.subr.mxu0 0.0
    %440 = vmatpush1.msra.mxu0 %v402
    %441 = vmatprep.subr.mxu0 0.0
    %442 = vmatpush1.msra.mxu0 %v401
    %443 = vmatprep.subr.mxu0 0.0
    %444 = vmatpush1.msra.mxu0 %v400
    %445 = vmatprep.subr.mxu0 0.0
    %446 = vmatpush1.msra.mxu0 %v399
    %447 = vmatprep.subr.mxu0 0.0
    %448 = vmatpush2.msra.mxu0 0.0
    %449 = vmatprep.subr.mxu0 0.0
    %450 = vmatpush2.msra.mxu0 0.0
    %451 = vmatprep.subr.mxu0 0.0
    %452 = vmatpush2.msra.mxu0 0.0
    %453 = vmatprep.subr.mxu0 0.0
    %454 = vmatpush2.msra.mxu0 0.0
    %455 = vmatprep.subr.mxu0 0.0
    %456 = vmatpush2.msra.mxu0 0.0
    %457 = vmatprep.subr.mxu0 0.0
    %458 = vmatpush2.msra.mxu0 0.0
    %459 = vmatprep.subr.mxu0 0.0
    %460 = vmatpush2.msra.mxu0 0.0
    %461 = vmatprep.subr.mxu0 0.0
    %462 = vmatpush2.msra.mxu0 0.0
    %463 = vmatprep.subr.mxu0 0.0
    %464 = vmatpush2.msra.mxu0 0.0
    %465 = vmatprep.subr.mxu0 0.0
    %466 = vmatpush2.msra.mxu0 0.0
    %467 = vmatprep.subr.mxu0 0.0
    %468 = vmatpush2.msra.mxu0 0.0
    %469 = vmatprep.subr.mxu0 0.0
    %470 = vmatpush2.msra.mxu0 0.0
    %471 = vmatprep.subr.mxu0 0.0
    %472 = vmatpush2.msra.mxu0 0.0
    %473 = vmatprep.subr.mxu0 0.0
    %474 = vmatpush2.msra.mxu0 0.0
    %475 = vmatprep.subr.mxu0 0.0
    %476 = vmatpush2.msra.mxu0 0.0
    %477 = vmatprep.subr.mxu0 0.0
    %478 = vmatpush2.msra.mxu0 0.0
    %479 = vmatprep.mubr.f32.mxu0 0.0
    %480 = vmatmul.mubr.f32.gmra.mxu0 %v398
    %v481 = vpop.f32.mrf.mxu0
    %v482 = vadd.f32 0.0, %v481
    %v483 = vpop.f32.mrf.mxu0
    %484 = vdwg.mxu0
    %v485 = vadd.f32 %v268, %v482
    %v486 = vld [vmem:[%s6] sm:$0x1]
    %v488 = vlaneseq
    %v489 = vshrl.u32 %v488, 7
    %v490 = vsub.s32 0, %v489
    %v491 = vrot.slane %v486, %v490
    %v493 = vadd.f32 %v485, %v491
    %v494 = vtanh.pop %v493
    %v495 = vsub.f32 %v81, %v494
    %v496 = vmul.f32 %v396, %v495
    %v497 = vadd.f32 %v494, %v496
    %498 = vst [vmem:[#allocation10] sm:$0xff] %v497
    // Predicated region
    $region46: #{tpu_custom_call.1} parent=1 // pred_check
      _
    $region47: #{tpu_custom_call.1} parent=1 // pred_check_branch
      %500 = sbr.rel (0) target = $region49
    $region48: #{tpu_custom_call.1} parent=1 // pred_region
      %s502 = ssub.s32 128, 128
      %503 = vsyncadd [#allocation4], %s502
      %s505 = sshll.u32 [#allocation10], 4
      %s506 = int_to_ptr.vmem [resolvable:$true] %s505
      %508 = dma.vmem_to_hbm [thread:$0]  %s506, 128, %s7, [#allocation4]
    $region49: #{tpu_custom_call.1} parent=1 // pred_fallthru
      _
    // Predicated region
    $region50: #{tpu_custom_call.1} parent=1 // pred_check
      _
    $region51: #{tpu_custom_call.1} parent=1 // pred_check_branch
      %510 = sbr.rel (0) target = $region53
    $region52: #{tpu_custom_call.1} parent=1 // pred_region
      %511 = dma.done [#allocation4], 128
    $region53: #{tpu_custom_call.1} parent=1 // pred_fallthru
      _
    %512 = vsyncpa [#allocation3], 1
    %513 = vsyncpa [#allocation6], 1
    %514 = vsyncpa [#allocation9], 1
    %515 = vsyncpa [#allocation4], 1

</llo_original>
